<compile_context>
chip_gen: v7x
topology: tpu7x:2x2x1
jax: 0.10.0
libtpu: 0.0.40
codegen_flags: <defaults>
</compile_context>

<pallas_src>
import functools

import jax
import jax.numpy as jnp
from jax.experimental import pallas as pl
from jax.experimental.pallas import tpu as pltpu

LANES = 128
CONV1_OUT, CONV2_OUT, CONV3_OUT, FC1_OUT = 32, 64, 64, 512   # fixed by the DQN spec


def _round_up(x, m):
    return ((x + m - 1) // m) * m


def _cdiv(a, b):
    return (a + b - 1) // b


def _row_tile(m, max_tile):
    """Row tile for the M (rows) grid axis.

    Full-array block when M is small (allowed by the (8,128) rule).  Otherwise
    pick an even number of grid steps — so v7x's two TensorCores get balanced
    work under dimension_semantics=("parallel",) — with tiles rounded to 32
    rows (covers uint8 sublane packing as well as bf16/f32).
    """
    if m <= max_tile:
        return m
    steps = 2 * _cdiv(m, 2 * max_tile)          # even step count, tiles <= max_tile
    return min(max_tile, _round_up(_cdiv(m, steps), 32))


def _compiler_params():
    # Footprint per grid step is < 2 MiB; 32 MiB limit is safe on v5e/v6e and
    # well under v7x's 64 MiB physical VMEM.
    return pltpu.CompilerParams(
        dimension_semantics=("parallel",),       # megacore split of row tiles on v7x
        vmem_limit_bytes=32 * 1024 * 1024,
    )


# ----------------------------------------------------------------------------
# Pallas kernels
# ----------------------------------------------------------------------------
def _matmul_bias_act_kernel(x_ref, w_ref, b_ref, o_ref, *, relu):
    """o = act(x @ w + b).  x may be uint8 (conv1 patches) or bf16; w is bf16;
    accumulation is f32 on the MXU; bias add + ReLU in f32."""
    x = x_ref[...]
    if x.dtype != jnp.bfloat16:
        # uint8 -> f32 -> bf16 on the VPU; hides under the MXU matmul.
        x = x.astype(jnp.float32).astype(jnp.bfloat16)
    acc = jnp.dot(x, w_ref[...], preferred_element_type=jnp.float32)
    acc = acc + b_ref[...]                       # (1, Np) broadcasts over rows
    if relu:
        acc = jnp.maximum(acc, 0.0)
    o_ref[...] = acc.astype(o_ref.dtype)


def _fc_head_kernel(x_ref, w1_ref, b1_ref, w2_ref, b2_ref, o_ref):
    """Fused fc1 -> ReLU -> fc2; both weight matrices stay VMEM-resident."""
    h = jnp.dot(x_ref[...], w1_ref[...], preferred_element_type=jnp.float32)
    h = jnp.maximum(h + b1_ref[...], 0.0)
    q = jnp.dot(h.astype(jnp.bfloat16), w2_ref[...],
                preferred_element_type=jnp.float32)
    o_ref[...] = (q + b2_ref[...]).astype(o_ref.dtype)


# ----------------------------------------------------------------------------
# pallas_call wrappers
# ----------------------------------------------------------------------------
def matmul_bias_relu(x, w, b, *, relu=True, out_dtype=jnp.bfloat16,
                     max_row_tile=512, input_buffers=None):
    """Row-tiled matmul + bias (+ReLU).  w: (K, Np) bf16, b: (1, Np) f32,
    Np % 128 == 0 (lane-dense, unmasked stores).  x may be uint8 or bf16."""
    M, K = x.shape
    K2, Np = w.shape
    assert K == K2 and Np % LANES == 0, (x.shape, w.shape)
    tm = _row_tile(M, max_row_tile)

    x_spec = pl.BlockSpec((tm, K), lambda i: (i, 0))          # pipelined row tiles
    if input_buffers is not None:
        # v5e knob: third (or deeper) buffer on the row-tile stream if a profile
        # shows exposed DMA on the big conv1 patch stream (~0.5 MB per buffer).
        x_spec = pl.BlockSpec((tm, K), lambda i: (i, 0),
                              pipeline_mode=pl.Buffered(input_buffers))

    return pl.pallas_call(
        functools.partial(_matmul_bias_act_kernel, relu=relu),
        out_shape=jax.ShapeDtypeStruct((M, Np), out_dtype),
        grid_spec=pltpu.PrefetchScalarGridSpec(
            num_scalar_prefetch=0,
            grid=(pl.cdiv(M, tm),),
            in_specs=[
                x_spec,
                pl.BlockSpec((K, Np), lambda i: (0, 0)),      # weights: VMEM-resident
                pl.BlockSpec((1, Np), lambda i: (0, 0)),      # bias
            ],
            out_specs=pl.BlockSpec((tm, Np), lambda i: (i, 0)),
        ),
        compiler_params=_compiler_params(),
    )(x, w, b)


def fc_head(x, w1, b1, w2, b2, *, max_row_tile=512):
    """Fused fc1+ReLU+fc2.  x: (B, K) bf16; w1: (K, 512); w2: (512, Np), Np%128==0.
    For small batches this is a single-step grid (accepted: tiny kernel)."""
    M, K = x.shape
    H = w1.shape[1]
    Np = w2.shape[1]
    assert w1.shape[0] == K and w2.shape[0] == H and Np % LANES == 0
    tm = _row_tile(M, max_row_tile)
    return pl.pallas_call(
        _fc_head_kernel,
        out_shape=jax.ShapeDtypeStruct((M, Np), jnp.float32),
        grid_spec=pltpu.PrefetchScalarGridSpec(
            num_scalar_prefetch=0,
            grid=(pl.cdiv(M, tm),),
            in_specs=[
                pl.BlockSpec((tm, K), lambda i: (i, 0)),
                pl.BlockSpec((K, H), lambda i: (0, 0)),
                pl.BlockSpec((1, H), lambda i: (0, 0)),
                pl.BlockSpec((H, Np), lambda i: (0, 0)),
                pl.BlockSpec((1, Np), lambda i: (0, 0)),
            ],
            out_specs=pl.BlockSpec((tm, Np), lambda i: (i, 0)),
        ),
        compiler_params=_compiler_params(),
    )(x, w1, b1, w2, b2)


# ----------------------------------------------------------------------------
# Plain-JAX glue: NHWC im2col (channel slice fused into the gather)
# ----------------------------------------------------------------------------
def _im2col_nhwc(x, kh, kw, stride, c_take=None):
    """x: (N, H, W, C) -> ((N*Ho*Wo, kh*kw*c), Ho, Wo).

    Rows ordered (n, ho, wo); columns ordered (kh, kw, c), matching a conv
    weight laid out as (kh, kw, in_c, out_c).reshape(kh*kw*in_c, out_c).
    `c_take < C` selects the real channels of a lane-padded activation inside
    the gather expression so XLA fuses the slice into the patch concatenate
    (no separate materializing slice pass over the activation).

    Kept as an explicit strided-slice gather (not conv_general_dilated_patches)
    so the uint8 conv1 input stays uint8 and the column order is exact.
    """
    N, H, W, C = x.shape
    c = C if c_take is None else c_take
    Ho = (H - kh) // stride + 1
    Wo = (W - kw) // stride + 1
    cols = []
    for i in range(kh):
        for j in range(kw):
            cols.append(x[:, i:i + stride * Ho:stride, j:j + stride * Wo:stride, :c])
    p = jnp.stack(cols, axis=3)                    # (N, Ho, Wo, kh*kw, c)
    return p.reshape(N * Ho * Wo, kh * kw * c), Ho, Wo


# ----------------------------------------------------------------------------
# One-time parameter prep (runs OUTSIDE the jitted forward)
# ----------------------------------------------------------------------------
def _conv_out(s, k, st):
    return (s - k) // st + 1


def _prep_conv_w(w, scale=None):
    """Torch OIHW conv weight -> (kh*kw*in_c, round_up(out_c, 128)) bf16 matrix."""
    O, I, kh, kw = w.shape
    m = w.transpose(2, 3, 1, 0).reshape(kh * kw * I, O)
    if scale is not None:
        m = m * scale
    m = jnp.pad(m, ((0, 0), (0, _round_up(O, LANES) - O)))
    return m.astype(jnp.bfloat16)


def _prep_bias(b):
    n = b.shape[0]
    lanes = _round_up(n, LANES)
    return jnp.pad(b, (0, lanes - n)).reshape(1, lanes).astype(jnp.float32)


def _prep_fc1_w(fc1_w, c, h3, w3):
    """(512, c*h3*w3) torch Linear weight (NCHW-flatten feature order) ->
    (h3*w3*c, 512) bf16 matrix matching the kernel's NHWC flatten order."""
    out_f = fc1_w.shape[0]
    m = fc1_w.reshape(out_f, c, h3, w3).transpose(2, 3, 1, 0)
    return m.reshape(h3 * w3 * c, out_f).astype(jnp.bfloat16)


def _prep_fc2_w(fc2_w):
    out_f = fc2_w.shape[0]                         # n_actions
    m = jnp.pad(fc2_w.T, ((0, 0), (0, _round_up(out_f, LANES) - out_f)))
    return m.astype(jnp.bfloat16)


def prepare_params(params, input_shape):
    """One-time layout/padding/cast of torch-style parameters into kernel-ready
    arrays.  Call once and reuse; nothing here re-runs inside the jitted forward."""
    _, h, w = input_shape
    h1o, w1o = _conv_out(h, 8, 4), _conv_out(w, 8, 4)
    h2o, w2o = _conv_out(h1o, 4, 2), _conv_out(w1o, 4, 2)
    h3o, w3o = _conv_out(h2o, 3, 1), _conv_out(w2o, 3, 1)
    return {
        # 1/255 folded into conv1's weight so the kernel consumes raw uint8 patches.
        "w1m": _prep_conv_w(params["w1"], scale=jnp.float32(1.0 / 255.0)),
        "b1": _prep_bias(params["b1"]),
        "w2m": _prep_conv_w(params["w2"]),
        "b2": _prep_bias(params["b2"]),
        "w3m": _prep_conv_w(params["w3"]),
        "b3": _prep_bias(params["b3"]),
        "fc1w": _prep_fc1_w(params["fc1_w"], CONV3_OUT, h3o, w3o),
        "fc1b": _prep_bias(params["fc1_b"]),
        "fc2w": _prep_fc2_w(params["fc2_w"]),
        "fc2b": _prep_bias(params["fc2_b"]),
    }


# ----------------------------------------------------------------------------
# Parameters (deterministic, PyTorch-default-style uniform init)
# ----------------------------------------------------------------------------
def init_params(key, input_shape, n_actions):
    c, h, w = input_shape
    ks = jax.random.split(key, 10)

    def u(k, shape, fan_in):
        bound = 1.0 / (fan_in ** 0.5)
        return jax.random.uniform(k, shape, jnp.float32, -bound, bound)

    h1, w1 = _conv_out(h, 8, 4), _conv_out(w, 8, 4)
    h2, w2 = _conv_out(h1, 4, 2), _conv_out(w1, 4, 2)
    h3, w3 = _conv_out(h2, 3, 1), _conv_out(w2, 3, 1)
    size = CONV3_OUT * h3 * w3                     # nn.Flatten output width

    return {
        "w1": u(ks[0], (CONV1_OUT, c, 8, 8), c * 8 * 8),
        "b1": u(ks[1], (CONV1_OUT,), c * 8 * 8),
        "w2": u(ks[2], (CONV2_OUT, CONV1_OUT, 4, 4), CONV1_OUT * 4 * 4),
        "b2": u(ks[3], (CONV2_OUT,), CONV1_OUT * 4 * 4),
        "w3": u(ks[4], (CONV3_OUT, CONV2_OUT, 3, 3), CONV2_OUT * 3 * 3),
        "b3": u(ks[5], (CONV3_OUT,), CONV2_OUT * 3 * 3),
        "fc1_w": u(ks[6], (FC1_OUT, size), size),
        "fc1_b": u(ks[7], (FC1_OUT,), size),
        "fc2_w": u(ks[8], (n_actions, FC1_OUT), FC1_OUT),
        "fc2_b": u(ks[9], (n_actions,), FC1_OUT),
    }


# ----------------------------------------------------------------------------
# Forward pass (Pallas) and a torch-faithful pure-JAX reference
# ----------------------------------------------------------------------------
def dqn_forward(prep, x_u8, *, n_actions):
    """x_u8: (N, C, H, W) uint8 (like the torch ByteTensor). Returns (N, n_actions) f32."""
    N = x_u8.shape[0]

    # Single cheap layout change on 1-byte data; channels-last afterwards.
    x = jnp.transpose(x_u8, (0, 2, 3, 1))

    # conv1 (k=8, s=4): uint8 patches straight into the kernel (cast on the VPU);
    # 1/255 already folded into w1m.  Bigger row tile: largest-M layer.
    p1, h1o, w1o = _im2col_nhwc(x, 8, 8, 4)
    h1 = matmul_bias_relu(p1, prep["w1m"], prep["b1"], max_row_tile=1024)
    h1 = h1.reshape(N, h1o, w1o, LANES)            # padded 128-ch, free reshape

    # conv2 (k=4, s=2): real-channel slice fused into the patch gather.
    p2, h2o, w2o = _im2col_nhwc(h1, 4, 4, 2, c_take=CONV1_OUT)
    h2 = matmul_bias_relu(p2, prep["w2m"], prep["b2"])
    h2 = h2.reshape(N, h2o, w2o, LANES)

    # conv3 (k=3, s=1)
    p3, h3o, w3o = _im2col_nhwc(h2, 3, 3, 1, c_take=CONV2_OUT)
    h3 = matmul_bias_relu(p3, prep["w3m"], prep["b3"])
    h3 = h3.reshape(N, h3o, w3o, LANES)

    # Flatten (NHWC order) + fused fc1/ReLU/fc2.  The tiny h3 channel slice is
    # kept in XLA glue: padding fc1's weight with zero rows instead would double
    # the per-forward fc1 weight stream at real (Atari) sizes.
    flat = h3[..., :CONV3_OUT].reshape(N, -1)
    q = fc_head(flat, prep["fc1w"], prep["fc1b"], prep["fc2w"], prep["fc2b"])
    return q[:, :n_actions]


def dqn_reference(params, x_u8):
    """Torch-faithful NCHW reference (f32) for verification."""
    x = x_u8.astype(jnp.float32) / 255.0

    def conv(x, w, b, s):
        y = jax.lax.conv_general_dilated(
            x, w, (s, s), "VALID", dimension_numbers=("NCHW", "OIHW", "NCHW"))
        return jax.nn.relu(y + b[None, :, None, None])

    h = conv(x, params["w1"], params["b1"], 4)
    h = conv(h, params["w2"], params["b2"], 2)
    h = conv(h, params["w3"], params["b3"], 1)
    flat = h.reshape(h.shape[0], -1)               # NCHW flatten, like nn.Flatten
    h = jax.nn.relu(flat @ params["fc1_w"].T + params["fc1_b"])
    return h @ params["fc2_w"].T + params["fc2_b"]


if __name__ == "__main__":
    key = jax.random.PRNGKey(0)
    input_shape = (4, 36, 36)      # smallest spatial size the conv stack accepts
    n_actions = 6
    batch = 2

    pkey, xkey = jax.random.split(key)
    params = init_params(pkey, input_shape, n_actions)
    x = jax.random.randint(
        xkey, (batch,) + input_shape, 0, 256, dtype=jnp.int32
    ).astype(jnp.uint8)

    # One-time parameter prep (outside jit), then a jitted forward that only
    # consumes kernel-ready arrays.
    prep = prepare_params(params, input_shape)
    fwd = jax.jit(functools.partial(dqn_forward, n_actions=n_actions))

    q = jax.block_until_ready(fwd(prep, x))
    assert q.shape == (batch, n_actions) and q.dtype == jnp.float32

    q_ref = jax.block_until_ready(dqn_reference(params, x))
    # bf16 MXU path vs f32 reference.
    assert jnp.allclose(q, q_ref, atol=5e-2, rtol=5e-2), (q, q_ref)

    print("KERNEL_OK")
</pallas_src>

<mosaic_0001>
module attributes {stable_mosaic.version = 11 : i64} {
  func.func @_matmul_bias_act_kernel(%arg0: i32, %arg1: memref<128x256xi8, #tpu.memory_space<vmem>>, %arg2: memref<256x128xbf16, #tpu.memory_space<vmem>>, %arg3: memref<1x128xf32, #tpu.memory_space<vmem>>, %arg4: memref<128x128xbf16, #tpu.memory_space<vmem>>) attributes {dimension_semantics = [#tpu.dimension_semantics<parallel>], iteration_bounds = array<i64: 1>, scalar_prefetch = 0 : i64, scratch_operands = 0 : i64, tpu.core_type = #tpu.core_type<tc>, window_params = [{transform_indices = @transform_0, window_bounds = array<i64: 128, 256>}, {pipeline_mode = #tpu.pipeline_mode<synchronous>, transform_indices = @transform_1, window_bounds = array<i64: 256, 128>}, {pipeline_mode = #tpu.pipeline_mode<synchronous>, transform_indices = @transform_2, window_bounds = array<i64: 1, 128>}, {transform_indices = @transform_3, window_bounds = array<i64: 128, 128>}]} {
    %c0 = arith.constant 0 : index
    %c0_0 = arith.constant 0 : index
    %0 = vector.load %arg1[%c0, %c0_0] : memref<128x256xi8, #tpu.memory_space<vmem>>, vector<128x256xi8>
    %1 = arith.uitofp %0 : vector<128x256xi8> to vector<128x256xf32>
    %2 = arith.truncf %1 : vector<128x256xf32> to vector<128x256xbf16>
    %c0_1 = arith.constant 0 : index
    %c0_2 = arith.constant 0 : index
    %3 = vector.load %arg2[%c0_1, %c0_2] : memref<256x128xbf16, #tpu.memory_space<vmem>>, vector<256x128xbf16>
    %cst = arith.constant dense<0.000000e+00> : vector<128x128xf32>
    %4 = tpu.matmul %2, %3, %cst {dimension_numbers = #tpu.dot_dimension_numbers<[1], [0], [0], [1], [0, 0, 1, 1], [], []>} : vector<128x256xbf16>, vector<256x128xbf16>, vector<128x128xf32> -> vector<128x128xf32>
    %c0_3 = arith.constant 0 : index
    %c0_4 = arith.constant 0 : index
    %5 = vector.load %arg3[%c0_3, %c0_4] : memref<1x128xf32, #tpu.memory_space<vmem>>, vector<1x128xf32>
    %6 = vector.broadcast %5 : vector<1x128xf32> to vector<128x128xf32>
    %7 = arith.addf %4, %6 : vector<128x128xf32>
    %cst_5 = arith.constant 0.000000e+00 : f32
    %8 = vector.broadcast %cst_5 : f32 to vector<128x128xf32>
    %9 = arith.maximumf %7, %8 : vector<128x128xf32>
    %10 = arith.truncf %9 : vector<128x128xf32> to vector<128x128xbf16>
    %c0_6 = arith.constant 0 : index
    %c0_7 = arith.constant 0 : index
    %11 = vector.load %arg4[%c0_6, %c0_7] : memref<128x128xbf16, #tpu.memory_space<vmem>>, vector<128x128xbf16>
    tpu.vector_store %arg4[%c0_6, %c0_7], %10 {strides = array<i32>} : memref<128x128xbf16, #tpu.memory_space<vmem>>, vector<128x128xbf16>,
    return
  }
  func.func @transform_0(%arg0: i32) -> (i32, i32) {
    %c0_i32 = arith.constant 0 : i32
    %c0_i32_0 = arith.constant 0 : i32
    return %arg0, %c0_i32 : i32, i32
  }
  func.func @transform_1(%arg0: i32) -> (i32, i32) {
    %c0_i32 = arith.constant 0 : i32
    %c0_i32_0 = arith.constant 0 : i32
    %c0_i32_1 = arith.constant 0 : i32
    return %c0_i32, %c0_i32_0 : i32, i32
  }
  func.func @transform_2(%arg0: i32) -> (i32, i32) {
    %c0_i32 = arith.constant 0 : i32
    %c0_i32_0 = arith.constant 0 : i32
    %c0_i32_1 = arith.constant 0 : i32
    return %c0_i32, %c0_i32_0 : i32, i32
  }
  func.func @transform_3(%arg0: i32) -> (i32, i32) {
    %c0_i32 = arith.constant 0 : i32
    %c0_i32_0 = arith.constant 0 : i32
    return %arg0, %c0_i32 : i32, i32
  }
}

module attributes {stable_mosaic.version = 11 : i64} {
  func.func @_matmul_bias_act_kernel(%arg0: i32, %arg1: memref<18x512xbf16, #tpu.memory_space<vmem>>, %arg2: memref<512x128xbf16, #tpu.memory_space<vmem>>, %arg3: memref<1x128xf32, #tpu.memory_space<vmem>>, %arg4: memref<18x128xbf16, #tpu.memory_space<vmem>>) attributes {dimension_semantics = [#tpu.dimension_semantics<parallel>], iteration_bounds = array<i64: 1>, scalar_prefetch = 0 : i64, scratch_operands = 0 : i64, tpu.core_type = #tpu.core_type<tc>, window_params = [{transform_indices = @transform_0, window_bounds = array<i64: 18, 512>}, {pipeline_mode = #tpu.pipeline_mode<synchronous>, transform_indices = @transform_1, window_bounds = array<i64: 512, 128>}, {pipeline_mode = #tpu.pipeline_mode<synchronous>, transform_indices = @transform_2, window_bounds = array<i64: 1, 128>}, {transform_indices = @transform_3, window_bounds = array<i64: 18, 128>}]} {
    %c0 = arith.constant 0 : index
    %c0_0 = arith.constant 0 : index
    %0 = vector.load %arg1[%c0, %c0_0] : memref<18x512xbf16, #tpu.memory_space<vmem>>, vector<18x512xbf16>
    %c0_1 = arith.constant 0 : index
    %c0_2 = arith.constant 0 : index
    %1 = vector.load %arg2[%c0_1, %c0_2] : memref<512x128xbf16, #tpu.memory_space<vmem>>, vector<512x128xbf16>
    %cst = arith.constant dense<0.000000e+00> : vector<18x128xf32>
    %2 = tpu.matmul %0, %1, %cst {dimension_numbers = #tpu.dot_dimension_numbers<[1], [0], [0], [1], [0, 0, 1, 1], [], []>} : vector<18x512xbf16>, vector<512x128xbf16>, vector<18x128xf32> -> vector<18x128xf32>
    %c0_3 = arith.constant 0 : index
    %c0_4 = arith.constant 0 : index
    %3 = vector.load %arg3[%c0_3, %c0_4] : memref<1x128xf32, #tpu.memory_space<vmem>>, vector<1x128xf32>
    %4 = vector.broadcast %3 : vector<1x128xf32> to vector<18x128xf32>
    %5 = arith.addf %2, %4 : vector<18x128xf32>
    %cst_5 = arith.constant 0.000000e+00 : f32
    %6 = vector.broadcast %cst_5 : f32 to vector<18x128xf32>
    %7 = arith.maximumf %5, %6 : vector<18x128xf32>
    %8 = arith.truncf %7 : vector<18x128xf32> to vector<18x128xbf16>
    %c0_6 = arith.constant 0 : index
    %c0_7 = arith.constant 0 : index
    %9 = vector.load %arg4[%c0_6, %c0_7] : memref<18x128xbf16, #tpu.memory_space<vmem>>, vector<18x128xbf16>
    tpu.vector_store %arg4[%c0_6, %c0_7], %8 {strides = array<i32>} : memref<18x128xbf16, #tpu.memory_space<vmem>>, vector<18x128xbf16>,
    return
  }
  func.func @transform_0(%arg0: i32) -> (i32, i32) {
    %c0_i32 = arith.constant 0 : i32
    %c0_i32_0 = arith.constant 0 : i32
    return %arg0, %c0_i32 : i32, i32
  }
  func.func @transform_1(%arg0: i32) -> (i32, i32) {
    %c0_i32 = arith.constant 0 : i32
    %c0_i32_0 = arith.constant 0 : i32
    %c0_i32_1 = arith.constant 0 : i32
    return %c0_i32, %c0_i32_0 : i32, i32
  }
  func.func @transform_2(%arg0: i32) -> (i32, i32) {
    %c0_i32 = arith.constant 0 : i32
    %c0_i32_0 = arith.constant 0 : i32
    %c0_i32_1 = arith.constant 0 : i32
    return %c0_i32, %c0_i32_0 : i32, i32
  }
  func.func @transform_3(%arg0: i32) -> (i32, i32) {
    %c0_i32 = arith.constant 0 : i32
    %c0_i32_0 = arith.constant 0 : i32
    return %arg0, %c0_i32 : i32, i32
  }
}

module attributes {stable_mosaic.version = 11 : i64} {
  func.func @_matmul_bias_act_kernel(%arg0: i32, %arg1: memref<2x576xbf16, #tpu.memory_space<vmem>>, %arg2: memref<576x128xbf16, #tpu.memory_space<vmem>>, %arg3: memref<1x128xf32, #tpu.memory_space<vmem>>, %arg4: memref<2x128xbf16, #tpu.memory_space<vmem>>) attributes {dimension_semantics = [#tpu.dimension_semantics<parallel>], iteration_bounds = array<i64: 1>, scalar_prefetch = 0 : i64, scratch_operands = 0 : i64, tpu.core_type = #tpu.core_type<tc>, window_params = [{transform_indices = @transform_0, window_bounds = array<i64: 2, 576>}, {pipeline_mode = #tpu.pipeline_mode<synchronous>, transform_indices = @transform_1, window_bounds = array<i64: 576, 128>}, {pipeline_mode = #tpu.pipeline_mode<synchronous>, transform_indices = @transform_2, window_bounds = array<i64: 1, 128>}, {transform_indices = @transform_3, window_bounds = array<i64: 2, 128>}]} {
    %c0 = arith.constant 0 : index
    %c0_0 = arith.constant 0 : index
    %0 = vector.load %arg1[%c0, %c0_0] : memref<2x576xbf16, #tpu.memory_space<vmem>>, vector<2x576xbf16>
    %c0_1 = arith.constant 0 : index
    %c0_2 = arith.constant 0 : index
    %1 = vector.load %arg2[%c0_1, %c0_2] : memref<576x128xbf16, #tpu.memory_space<vmem>>, vector<576x128xbf16>
    %cst = arith.constant dense<0.000000e+00> : vector<2x128xf32>
    %2 = tpu.matmul %0, %1, %cst {dimension_numbers = #tpu.dot_dimension_numbers<[1], [0], [0], [1], [0, 0, 1, 1], [], []>} : vector<2x576xbf16>, vector<576x128xbf16>, vector<2x128xf32> -> vector<2x128xf32>
    %c0_3 = arith.constant 0 : index
    %c0_4 = arith.constant 0 : index
    %3 = vector.load %arg3[%c0_3, %c0_4] : memref<1x128xf32, #tpu.memory_space<vmem>>, vector<1x128xf32>
    %4 = vector.broadcast %3 : vector<1x128xf32> to vector<2x128xf32>
    %5 = arith.addf %2, %4 : vector<2x128xf32>
    %cst_5 = arith.constant 0.000000e+00 : f32
    %6 = vector.broadcast %cst_5 : f32 to vector<2x128xf32>
    %7 = arith.maximumf %5, %6 : vector<2x128xf32>
    %8 = arith.truncf %7 : vector<2x128xf32> to vector<2x128xbf16>
    %c0_6 = arith.constant 0 : index
    %c0_7 = arith.constant 0 : index
    %9 = vector.load %arg4[%c0_6, %c0_7] : memref<2x128xbf16, #tpu.memory_space<vmem>>, vector<2x128xbf16>
    tpu.vector_store %arg4[%c0_6, %c0_7], %8 {strides = array<i32>} : memref<2x128xbf16, #tpu.memory_space<vmem>>, vector<2x128xbf16>,
    return
  }
  func.func @transform_0(%arg0: i32) -> (i32, i32) {
    %c0_i32 = arith.constant 0 : i32
    %c0_i32_0 = arith.constant 0 : i32
    return %arg0, %c0_i32 : i32, i32
  }
  func.func @transform_1(%arg0: i32) -> (i32, i32) {
    %c0_i32 = arith.constant 0 : i32
    %c0_i32_0 = arith.constant 0 : i32
    %c0_i32_1 = arith.constant 0 : i32
    return %c0_i32, %c0_i32_0 : i32, i32
  }
  func.func @transform_2(%arg0: i32) -> (i32, i32) {
    %c0_i32 = arith.constant 0 : i32
    %c0_i32_0 = arith.constant 0 : i32
    %c0_i32_1 = arith.constant 0 : i32
    return %c0_i32, %c0_i32_0 : i32, i32
  }
  func.func @transform_3(%arg0: i32) -> (i32, i32) {
    %c0_i32 = arith.constant 0 : i32
    %c0_i32_0 = arith.constant 0 : i32
    return %arg0, %c0_i32 : i32, i32
  }
}

module attributes {stable_mosaic.version = 11 : i64} {
  func.func @_fc_head_kernel(%arg0: i32, %arg1: memref<2x64xbf16, #tpu.memory_space<vmem>>, %arg2: memref<64x512xbf16, #tpu.memory_space<vmem>>, %arg3: memref<1x512xf32, #tpu.memory_space<vmem>>, %arg4: memref<512x128xbf16, #tpu.memory_space<vmem>>, %arg5: memref<1x128xf32, #tpu.memory_space<vmem>>, %arg6: memref<2x128xf32, #tpu.memory_space<vmem>>) attributes {dimension_semantics = [#tpu.dimension_semantics<parallel>], iteration_bounds = array<i64: 1>, scalar_prefetch = 0 : i64, scratch_operands = 0 : i64, tpu.core_type = #tpu.core_type<tc>, window_params = [{transform_indices = @transform_0, window_bounds = array<i64: 2, 64>}, {pipeline_mode = #tpu.pipeline_mode<synchronous>, transform_indices = @transform_1, window_bounds = array<i64: 64, 512>}, {pipeline_mode = #tpu.pipeline_mode<synchronous>, transform_indices = @transform_2, window_bounds = array<i64: 1, 512>}, {pipeline_mode = #tpu.pipeline_mode<synchronous>, transform_indices = @transform_3, window_bounds = array<i64: 512, 128>}, {pipeline_mode = #tpu.pipeline_mode<synchronous>, transform_indices = @transform_4, window_bounds = array<i64: 1, 128>}, {transform_indices = @transform_5, window_bounds = array<i64: 2, 128>}]} {
    %c0 = arith.constant 0 : index
    %c0_0 = arith.constant 0 : index
    %0 = vector.load %arg1[%c0, %c0_0] : memref<2x64xbf16, #tpu.memory_space<vmem>>, vector<2x64xbf16>
    %c0_1 = arith.constant 0 : index
    %c0_2 = arith.constant 0 : index
    %1 = vector.load %arg2[%c0_1, %c0_2] : memref<64x512xbf16, #tpu.memory_space<vmem>>, vector<64x512xbf16>
    %cst = arith.constant dense<0.000000e+00> : vector<2x512xf32>
    %2 = tpu.matmul %0, %1, %cst {dimension_numbers = #tpu.dot_dimension_numbers<[1], [0], [0], [1], [0, 0, 1, 1], [], []>} : vector<2x64xbf16>, vector<64x512xbf16>, vector<2x512xf32> -> vector<2x512xf32>
    %c0_3 = arith.constant 0 : index
    %c0_4 = arith.constant 0 : index
    %3 = vector.load %arg3[%c0_3, %c0_4] : memref<1x512xf32, #tpu.memory_space<vmem>>, vector<1x512xf32>
    %4 = vector.broadcast %3 : vector<1x512xf32> to vector<2x512xf32>
    %5 = arith.addf %2, %4 : vector<2x512xf32>
    %cst_5 = arith.constant 0.000000e+00 : f32
    %6 = vector.broadcast %cst_5 : f32 to vector<2x512xf32>
    %7 = arith.maximumf %5, %6 : vector<2x512xf32>
    %8 = arith.truncf %7 : vector<2x512xf32> to vector<2x512xbf16>
    %c0_6 = arith.constant 0 : index
    %c0_7 = arith.constant 0 : index
    %9 = vector.load %arg4[%c0_6, %c0_7] : memref<512x128xbf16, #tpu.memory_space<vmem>>, vector<512x128xbf16>
    %cst_8 = arith.constant dense<0.000000e+00> : vector<2x128xf32>
    %10 = tpu.matmul %8, %9, %cst_8 {dimension_numbers = #tpu.dot_dimension_numbers<[1], [0], [0], [1], [0, 0, 1, 1], [], []>} : vector<2x512xbf16>, vector<512x128xbf16>, vector<2x128xf32> -> vector<2x128xf32>
    %c0_9 = arith.constant 0 : index
    %c0_10 = arith.constant 0 : index
    %11 = vector.load %arg5[%c0_9, %c0_10] : memref<1x128xf32, #tpu.memory_space<vmem>>, vector<1x128xf32>
    %12 = vector.broadcast %11 : vector<1x128xf32> to vector<2x128xf32>
    %13 = arith.addf %10, %12 : vector<2x128xf32>
    %c0_11 = arith.constant 0 : index
    %c0_12 = arith.constant 0 : index
    %14 = vector.load %arg6[%c0_11, %c0_12] : memref<2x128xf32, #tpu.memory_space<vmem>>, vector<2x128xf32>
    tpu.vector_store %arg6[%c0_11, %c0_12], %13 {strides = array<i32>} : memref<2x128xf32, #tpu.memory_space<vmem>>, vector<2x128xf32>,
    return
  }
  func.func @transform_0(%arg0: i32) -> (i32, i32) {
    %c0_i32 = arith.constant 0 : i32
    %c0_i32_0 = arith.constant 0 : i32
    return %arg0, %c0_i32 : i32, i32
  }
  func.func @transform_1(%arg0: i32) -> (i32, i32) {
    %c0_i32 = arith.constant 0 : i32
    %c0_i32_0 = arith.constant 0 : i32
    %c0_i32_1 = arith.constant 0 : i32
    return %c0_i32, %c0_i32_0 : i32, i32
  }
  func.func @transform_2(%arg0: i32) -> (i32, i32) {
    %c0_i32 = arith.constant 0 : i32
    %c0_i32_0 = arith.constant 0 : i32
    %c0_i32_1 = arith.constant 0 : i32
    return %c0_i32, %c0_i32_0 : i32, i32
  }
  func.func @transform_3(%arg0: i32) -> (i32, i32) {
    %c0_i32 = arith.constant 0 : i32
    %c0_i32_0 = arith.constant 0 : i32
    %c0_i32_1 = arith.constant 0 : i32
    return %c0_i32, %c0_i32_0 : i32, i32
  }
  func.func @transform_4(%arg0: i32) -> (i32, i32) {
    %c0_i32 = arith.constant 0 : i32
    %c0_i32_0 = arith.constant 0 : i32
    %c0_i32_1 = arith.constant 0 : i32
    return %c0_i32, %c0_i32_0 : i32, i32
  }
  func.func @transform_5(%arg0: i32) -> (i32, i32) {
    %c0_i32 = arith.constant 0 : i32
    %c0_i32_0 = arith.constant 0 : i32
    return %arg0, %c0_i32 : i32, i32
  }
}

</mosaic_0001>

<llo_original>
// kernel: dqn_forward.4
$region0: #{dqn_forward.4}
  #allocation0 [shape = 'u32[]', space=smem, size = 0x4, offset = 0x4, fixed_abs, tag = 'smem constant byte address 0x4 - core index']
  #allocation1 [shape = 'u32[144,128]{1,0:T(1,128)}', space=vmem, size = 0x12000, scoped, tag = 'internal scratch']
  %s0 = inlined_call_operand.vmem [shape: u8[128,256], index: 0, kind: input, shape index: {}]
  %s1 = inlined_call_operand.vmem [shape: bf16[256,128], index: 1, kind: input, shape index: {}]
  %s2 = inlined_call_operand.vmem [shape: f32[1,128], index: 2, kind: input, shape index: {}]
  %s3 = inlined_call_operand.vmem [shape: bf16[128,128], index: 3, kind: output, shape index: {}]
  %s4 = sld [smem:[#allocation0]]
  $region22: #{dqn_forward.4} parent=0
    _
  %s6 = ssub.s32 1, %s4
  %s7 = scalar_select 0, %s6, %s4
  // Predicated region
  $region2: #{dqn_forward.4} parent=0 // pred_check
    _
  $region3: #{dqn_forward.4} parent=0 // pred_check_branch
    %9 = sbr.rel (0) target = $region5
  $region4: #{dqn_forward.4} parent=0 // pred_region
    _
  $region5: #{dqn_forward.4} parent=0 // pred_fallthru
    _
  // Predicated region
  $region6: #{dqn_forward.4} parent=0 // pred_check
    _
  $region7: #{dqn_forward.4} parent=0 // pred_check_branch
    %11 = sbr.rel (0) target = $region9
  $region8: #{dqn_forward.4} parent=0 // pred_region
    _
  $region9: #{dqn_forward.4} parent=0 // pred_fallthru
    _
  // Predicated region
  $region10: #{dqn_forward.4} parent=0 // pred_check
    _
  $region11: #{dqn_forward.4} parent=0 // pred_check_branch
    %13 = sbr.rel (0) target = $region13
  $region12: #{dqn_forward.4} parent=0 // pred_region
    _
  $region13: #{dqn_forward.4} parent=0 // pred_fallthru
    _
  %v15 = vld [vmem:[%s0] sm:$0xff]
  %v16 = vld [vmem:[%s0 + $0x8] sm:$0xff]
  %v17 = vld [vmem:[%s0 + $0x10] sm:$0xff]
  %v18 = vld [vmem:[%s0 + $0x18] sm:$0xff]
  %v19 = vld [vmem:[%s0 + $0x20] sm:$0xff]
  %v20 = vld [vmem:[%s0 + $0x28] sm:$0xff]
  %v21 = vld [vmem:[%s0 + $0x30] sm:$0xff]
  %v22 = vld [vmem:[%s0 + $0x38] sm:$0xff]
  %v23 = vunpack.c.l.u8.bf16 %v15
  %v24 = vunpack.c.l.u8.bf16 %v16
  %v25 = vunpack.c.h.u8.bf16 %v15
  %v26 = vunpack.c.h.u8.bf16 %v16
  %v27 = vunpack.c.l.u8.bf16 %v17
  %v28 = vunpack.c.l.u8.bf16 %v18
  %v29 = vunpack.c.h.u8.bf16 %v17
  %v30 = vunpack.c.h.u8.bf16 %v18
  %v31 = vunpack.c.l.u8.bf16 %v19
  %v32 = vunpack.c.l.u8.bf16 %v20
  %v33 = vunpack.c.h.u8.bf16 %v19
  %v34 = vunpack.c.h.u8.bf16 %v20
  %v35 = vunpack.c.l.u8.bf16 %v21
  %v36 = vunpack.c.l.u8.bf16 %v22
  %v37 = vunpack.c.h.u8.bf16 %v21
  %v38 = vunpack.c.h.u8.bf16 %v22
  %v39 = vld [vmem:[%s1] sm:$0xf]
  %v40 = vld [vmem:[%s1 + $0x4] sm:$0xf]
  %v41 = vld [vmem:[%s1 + $0x8] sm:$0xf]
  %v42 = vld [vmem:[%s1 + $0xc] sm:$0xf]
  %v43 = vld [vmem:[%s1 + $0x10] sm:$0xf]
  %v44 = vld [vmem:[%s1 + $0x14] sm:$0xf]
  %v45 = vld [vmem:[%s1 + $0x18] sm:$0xf]
  %v46 = vld [vmem:[%s1 + $0x1c] sm:$0xf]
  %v47 = vld [vmem:[%s1 + $0x20] sm:$0xf]
  %v48 = vld [vmem:[%s1 + $0x24] sm:$0xf]
  %v49 = vld [vmem:[%s1 + $0x28] sm:$0xf]
  %v50 = vld [vmem:[%s1 + $0x2c] sm:$0xf]
  %v51 = vld [vmem:[%s1 + $0x30] sm:$0xf]
  %v52 = vld [vmem:[%s1 + $0x34] sm:$0xf]
  %v53 = vld [vmem:[%s1 + $0x38] sm:$0xf]
  %v54 = vld [vmem:[%s1 + $0x3c] sm:$0xf]
  %v55 = vld [vmem:[%s1 + $0x40] sm:$0xf]
  %v56 = vld [vmem:[%s1 + $0x44] sm:$0xf]
  %v57 = vld [vmem:[%s1 + $0x48] sm:$0xf]
  %v58 = vld [vmem:[%s1 + $0x4c] sm:$0xf]
  %v59 = vld [vmem:[%s1 + $0x50] sm:$0xf]
  %v60 = vld [vmem:[%s1 + $0x54] sm:$0xf]
  %v61 = vld [vmem:[%s1 + $0x58] sm:$0xf]
  %v62 = vld [vmem:[%s1 + $0x5c] sm:$0xf]
  %v63 = vld [vmem:[%s1 + $0x60] sm:$0xf]
  %v64 = vld [vmem:[%s1 + $0x64] sm:$0xf]
  %v65 = vld [vmem:[%s1 + $0x68] sm:$0xf]
  %v66 = vld [vmem:[%s1 + $0x6c] sm:$0xf]
  %v67 = vld [vmem:[%s1 + $0x70] sm:$0xf]
  %v68 = vld [vmem:[%s1 + $0x74] sm:$0xf]
  %v69 = vld [vmem:[%s1 + $0x78] sm:$0xf]
  %v70 = vld [vmem:[%s1 + $0x7c] sm:$0xf]
  %v71 = vld [vmem:[%s2] sm:$0x1]
  %v73 = vlaneseq
  %v74 = vshrl.u32 %v73, 7
  %v75 = vsub.s32 0, %v74
  %v76 = vrot.slane %v71, %v75
  %v110 = vunpack.c.l.b16 %v39
  %v111 = vunpack.c.l.b16 %v40
  %v112 = vunpack.c.l.b16 %v41
  %v113 = vunpack.c.l.b16 %v42
  %v114 = vunpack.c.l.b16 %v43
  %v115 = vunpack.c.l.b16 %v44
  %v116 = vunpack.c.l.b16 %v45
  %v117 = vunpack.c.l.b16 %v46
  %v118 = vunpack.c.l.b16 %v47
  %v119 = vunpack.c.l.b16 %v48
  %v120 = vunpack.c.l.b16 %v49
  %v121 = vunpack.c.l.b16 %v50
  %v122 = vunpack.c.l.b16 %v51
  %v123 = vunpack.c.l.b16 %v52
  %v124 = vunpack.c.l.b16 %v53
  %v125 = vunpack.c.l.b16 %v54
  %v126 = vunpack.c.l.b16 %v55
  %v127 = vunpack.c.l.b16 %v56
  %v128 = vunpack.c.l.b16 %v57
  %v129 = vunpack.c.l.b16 %v58
  %v130 = vunpack.c.l.b16 %v59
  %v131 = vunpack.c.l.b16 %v60
  %v132 = vunpack.c.l.b16 %v61
  %v133 = vunpack.c.l.b16 %v62
  %v134 = vunpack.c.l.b16 %v63
  %v135 = vunpack.c.l.b16 %v64
  %v136 = vunpack.c.l.b16 %v65
  %v137 = vunpack.c.l.b16 %v66
  %v138 = vunpack.c.l.b16 %v67
  %v139 = vunpack.c.l.b16 %v68
  %v140 = vunpack.c.l.b16 %v69
  %v141 = vunpack.c.l.b16 %v70
  %v142 = vpack.c.b16 %v111, %v110
  %v143 = vpack.c.b16 %v113, %v112
  %v144 = vpack.c.b16 %v115, %v114
  %v145 = vpack.c.b16 %v117, %v116
  %v146 = vpack.c.b16 %v119, %v118
  %v147 = vpack.c.b16 %v121, %v120
  %v148 = vpack.c.b16 %v123, %v122
  %v149 = vpack.c.b16 %v125, %v124
  %v150 = vpack.c.b16 %v127, %v126
  %v151 = vpack.c.b16 %v129, %v128
  %v152 = vpack.c.b16 %v131, %v130
  %v153 = vpack.c.b16 %v133, %v132
  %v154 = vpack.c.b16 %v135, %v134
  %v155 = vpack.c.b16 %v137, %v136
  %v156 = vpack.c.b16 %v139, %v138
  %v157 = vpack.c.b16 %v141, %v140
  %174 = vmatprep.subr.bf16.mxu0 0
  %175 = vmatpush1.bf16.msra.mxu0 %v142
  %176 = vmatprep.subr.bf16.mxu0 0
  %177 = vmatpush1.bf16.msra.mxu0 %v143
  %178 = vmatprep.subr.bf16.mxu0 0
  %179 = vmatpush1.bf16.msra.mxu0 %v144
  %180 = vmatprep.subr.bf16.mxu0 0
  %181 = vmatpush1.bf16.msra.mxu0 %v145
  %182 = vmatprep.subr.bf16.mxu0 0
  %183 = vmatpush1.bf16.msra.mxu0 %v146
  %184 = vmatprep.subr.bf16.mxu0 0
  %185 = vmatpush1.bf16.msra.mxu0 %v147
  %186 = vmatprep.subr.bf16.mxu0 0
  %187 = vmatpush1.bf16.msra.mxu0 %v148
  %188 = vmatprep.subr.bf16.mxu0 0
  %189 = vmatpush1.bf16.msra.mxu0 %v149
  %190 = vmatprep.subr.bf16.mxu0 0
  %191 = vmatpush1.bf16.msra.mxu0 %v150
  %192 = vmatprep.subr.bf16.mxu0 0
  %193 = vmatpush1.bf16.msra.mxu0 %v151
  %194 = vmatprep.subr.bf16.mxu0 0
  %195 = vmatpush1.bf16.msra.mxu0 %v152
  %196 = vmatprep.subr.bf16.mxu0 0
  %197 = vmatpush1.bf16.msra.mxu0 %v153
  %198 = vmatprep.subr.bf16.mxu0 0
  %199 = vmatpush1.bf16.msra.mxu0 %v154
  %200 = vmatprep.subr.bf16.mxu0 0
  %201 = vmatpush1.bf16.msra.mxu0 %v155
  %202 = vmatprep.subr.bf16.mxu0 0
  %203 = vmatpush1.bf16.msra.mxu0 %v156
  %204 = vmatprep.subr.bf16.mxu0 0
  %205 = vmatpush1.bf16.msra.mxu0 %v157
  %206 = vmatprep.mubr.bf16.mxu0 %v24
  %207 = vmatmul.mubr.bf16.gmra.mrb[0].mxu0 %v23
  %v208 = vpop.f32.mrb[0].mxu0
  %v209 = vadd.f32 %v76, %v208
  %v210 = vpop.f32.mrb[0].mxu0
  %v211 = vpop.f32.mrb[0].mxu0
  %v212 = vadd.f32 %v76, %v211
  %v213 = vpop.f32.mrb[0].mxu0
  %214 = vmatprep.mubr.bf16.mxu0 %v26
  %215 = vmatmul.mubr.bf16.gmra.mrb[0].mxu0 %v25
  %v216 = vpop.f32.mrb[0].mxu0
  %v217 = vadd.f32 %v76, %v216
  %v218 = vpop.f32.mrb[0].mxu0
  %v219 = vpop.f32.mrb[0].mxu0
  %v220 = vadd.f32 %v76, %v219
  %v221 = vpop.f32.mrb[0].mxu0
  %222 = vmatprep.mubr.bf16.mxu0 %v28
  %223 = vmatmul.mubr.bf16.gmra.mrb[0].mxu0 %v27
  %v224 = vpop.f32.mrb[0].mxu0
  %v225 = vadd.f32 %v76, %v224
  %v226 = vpop.f32.mrb[0].mxu0
  %v227 = vpop.f32.mrb[0].mxu0
  %v228 = vadd.f32 %v76, %v227
  %v229 = vpop.f32.mrb[0].mxu0
  %230 = vmatprep.mubr.bf16.mxu0 %v30
  %231 = vmatmul.mubr.bf16.gmra.mrb[0].mxu0 %v29
  %v232 = vpop.f32.mrb[0].mxu0
  %v233 = vadd.f32 %v76, %v232
  %v234 = vpop.f32.mrb[0].mxu0
  %v235 = vpop.f32.mrb[0].mxu0
  %v236 = vadd.f32 %v76, %v235
  %v237 = vpop.f32.mrb[0].mxu0
  %238 = vmatprep.mubr.bf16.mxu0 %v32
  %239 = vmatmul.mubr.bf16.gmra.mrb[0].mxu0 %v31
  %v240 = vpop.f32.mrb[0].mxu0
  %v241 = vadd.f32 %v76, %v240
  %v242 = vpop.f32.mrb[0].mxu0
  %v243 = vpop.f32.mrb[0].mxu0
  %v244 = vadd.f32 %v76, %v243
  %v245 = vpop.f32.mrb[0].mxu0
  %246 = vmatprep.mubr.bf16.mxu0 %v34
  %247 = vmatmul.mubr.bf16.gmra.mrb[0].mxu0 %v33
  %v248 = vpop.f32.mrb[0].mxu0
  %v249 = vadd.f32 %v76, %v248
  %v250 = vpop.f32.mrb[0].mxu0
  %v251 = vpop.f32.mrb[0].mxu0
  %v252 = vadd.f32 %v76, %v251
  %v253 = vpop.f32.mrb[0].mxu0
  %254 = vmatprep.mubr.bf16.mxu0 %v36
  %255 = vmatmul.mubr.bf16.gmra.mrb[0].mxu0 %v35
  %v256 = vpop.f32.mrb[0].mxu0
  %v257 = vadd.f32 %v76, %v256
  %v258 = vpop.f32.mrb[0].mxu0
  %v259 = vpop.f32.mrb[0].mxu0
  %v260 = vadd.f32 %v76, %v259
  %v261 = vpop.f32.mrb[0].mxu0
  %262 = vmatprep.mubr.bf16.mxu0 %v38
  %263 = vmatmul.mubr.bf16.gmra.mrb[0].mxu0 %v37
  %v264 = vpop.f32.mrb[0].mxu0
  %v265 = vadd.f32 %v76, %v264
  %v266 = vpop.f32.mrb[0].mxu0
  %v267 = vpop.f32.mrb[0].mxu0
  %v268 = vadd.f32 %v76, %v267
  %v269 = vpop.f32.mrb[0].mxu0
  %270 = vdwg.mxu0
  %v271 = vmax.f32 %v209, 0.0
  %v272 = vmax.f32 %v212, 0.0
  %v273 = vmax.f32 %v217, 0.0
  %v274 = vmax.f32 %v220, 0.0
  %v275 = vmax.f32 %v225, 0.0
  %v276 = vmax.f32 %v228, 0.0
  %v277 = vmax.f32 %v233, 0.0
  %v278 = vmax.f32 %v236, 0.0
  %v279 = vmax.f32 %v241, 0.0
  %v280 = vmax.f32 %v244, 0.0
  %v281 = vmax.f32 %v249, 0.0
  %v282 = vmax.f32 %v252, 0.0
  %v283 = vmax.f32 %v257, 0.0
  %v284 = vmax.f32 %v260, 0.0
  %v285 = vmax.f32 %v265, 0.0
  %v286 = vmax.f32 %v268, 0.0
  %v287 = vpack.c.bf16 %v272, %v271
  %v288 = vpack.c.bf16 %v274, %v273
  %v289 = vpack.c.bf16 %v276, %v275
  %v290 = vpack.c.bf16 %v278, %v277
  %v291 = vpack.c.bf16 %v280, %v279
  %v292 = vpack.c.bf16 %v282, %v281
  %v293 = vpack.c.bf16 %v284, %v283
  %v294 = vpack.c.bf16 %v286, %v285
  %v303 = vunpack.c.l.b16 %v287
  %v304 = vunpack.c.h.b16 %v287
  %v305 = vunpack.c.l.b16 %v288
  %v306 = vunpack.c.h.b16 %v288
  %v307 = vunpack.c.l.b16 %v289
  %v308 = vunpack.c.h.b16 %v289
  %v309 = vunpack.c.l.b16 %v290
  %v310 = vunpack.c.h.b16 %v290
  %v311 = vunpack.c.l.b16 %v291
  %v312 = vunpack.c.h.b16 %v291
  %v313 = vunpack.c.l.b16 %v292
  %v314 = vunpack.c.h.b16 %v292
  %v315 = vunpack.c.l.b16 %v293
  %v316 = vunpack.c.h.b16 %v293
  %v317 = vunpack.c.l.b16 %v294
  %v318 = vunpack.c.h.b16 %v294
  %v319 = vpack.c.b16 %v303, %v303
  %v320 = vpack.c.b16 %v304, %v304
  %v321 = vpack.c.b16 %v305, %v305
  %v322 = vpack.c.b16 %v306, %v306
  %v323 = vpack.c.b16 %v307, %v307
  %v324 = vpack.c.b16 %v308, %v308
  %v325 = vpack.c.b16 %v309, %v309
  %v326 = vpack.c.b16 %v310, %v310
  %v327 = vpack.c.b16 %v311, %v311
  %v328 = vpack.c.b16 %v312, %v312
  %v329 = vpack.c.b16 %v313, %v313
  %v330 = vpack.c.b16 %v314, %v314
  %v331 = vpack.c.b16 %v315, %v315
  %v332 = vpack.c.b16 %v316, %v316
  %v333 = vpack.c.b16 %v317, %v317
  %v334 = vpack.c.b16 %v318, %v318
  %351 = vst [vmem:[%s3] sm:$0xf] %v319
  %352 = vst [vmem:[%s3 + $0x4] sm:$0xf] %v320
  %353 = vst [vmem:[%s3 + $0x8] sm:$0xf] %v321
  %354 = vst [vmem:[%s3 + $0xc] sm:$0xf] %v322
  %355 = vst [vmem:[%s3 + $0x10] sm:$0xf] %v323
  %356 = vst [vmem:[%s3 + $0x14] sm:$0xf] %v324
  %357 = vst [vmem:[%s3 + $0x18] sm:$0xf] %v325
  %358 = vst [vmem:[%s3 + $0x1c] sm:$0xf] %v326
  %359 = vst [vmem:[%s3 + $0x20] sm:$0xf] %v327
  %360 = vst [vmem:[%s3 + $0x24] sm:$0xf] %v328
  %361 = vst [vmem:[%s3 + $0x28] sm:$0xf] %v329
  %362 = vst [vmem:[%s3 + $0x2c] sm:$0xf] %v330
  %363 = vst [vmem:[%s3 + $0x30] sm:$0xf] %v331
  %364 = vst [vmem:[%s3 + $0x34] sm:$0xf] %v332
  %365 = vst [vmem:[%s3 + $0x38] sm:$0xf] %v333
  %366 = vst [vmem:[%s3 + $0x3c] sm:$0xf] %v334
  // Predicated region
  $region14: #{dqn_forward.4} parent=0 // pred_check
    _
  $region15: #{dqn_forward.4} parent=0 // pred_check_branch
    %368 = sbr.rel (0) target = $region17
  $region16: #{dqn_forward.4} parent=0 // pred_region
    _
  $region17: #{dqn_forward.4} parent=0 // pred_fallthru
    _
  // Predicated region
  $region18: #{dqn_forward.4} parent=0 // pred_check
    _
  $region19: #{dqn_forward.4} parent=0 // pred_check_branch
    %370 = sbr.rel (0) target = $region21
  $region20: #{dqn_forward.4} parent=0 // pred_region
    _
  $region21: #{dqn_forward.4} parent=0 // pred_fallthru
    _

// kernel: dqn_forward.5
$region0: #{dqn_forward.5}
  #allocation0 [shape = 'u32[]', space=smem, size = 0x4, offset = 0x4, fixed_abs, tag = 'smem constant byte address 0x4 - core index']
  #allocation1 [shape = 'u32[144,128]{1,0:T(1,128)}', space=vmem, size = 0x12000, scoped, tag = 'internal scratch']
  %s0 = inlined_call_operand.vmem [shape: bf16[18,512], index: 0, kind: input, shape index: {}]
  %s1 = inlined_call_operand.vmem [shape: bf16[512,128], index: 1, kind: input, shape index: {}]
  %s2 = inlined_call_operand.vmem [shape: f32[1,128], index: 2, kind: input, shape index: {}]
  %s3 = inlined_call_operand.vmem [shape: bf16[18,128], index: 3, kind: output, shape index: {}]
  %s4 = sld [smem:[#allocation0]]
  $region22: #{dqn_forward.5} parent=0
    _
  %s6 = ssub.s32 1, %s4
  %s7 = scalar_select 0, %s6, %s4
  // Predicated region
  $region2: #{dqn_forward.5} parent=0 // pred_check
    _
  $region3: #{dqn_forward.5} parent=0 // pred_check_branch
    %9 = sbr.rel (0) target = $region5
  $region4: #{dqn_forward.5} parent=0 // pred_region
    _
  $region5: #{dqn_forward.5} parent=0 // pred_fallthru
    _
  // Predicated region
  $region6: #{dqn_forward.5} parent=0 // pred_check
    _
  $region7: #{dqn_forward.5} parent=0 // pred_check_branch
    %11 = sbr.rel (0) target = $region9
  $region8: #{dqn_forward.5} parent=0 // pred_region
    _
  $region9: #{dqn_forward.5} parent=0 // pred_fallthru
    _
  // Predicated region
  $region10: #{dqn_forward.5} parent=0 // pred_check
    _
  $region11: #{dqn_forward.5} parent=0 // pred_check_branch
    %13 = sbr.rel (0) target = $region13
  $region12: #{dqn_forward.5} parent=0 // pred_region
    _
  $region13: #{dqn_forward.5} parent=0 // pred_fallthru
    _
  %v15 = vld [vmem:[%s0] sm:$0xff]
  %v16 = vld [vmem:[%s0 + $0x8] sm:$0xff]
  %v17 = vld [vmem:[%s0 + $0x10] sm:$0xff]
  %v18 = vld [vmem:[%s0 + $0x18] sm:$0xff]
  %v19 = vld [vmem:[%s0 + $0x20] sm:$0x11]
  %v20 = vld [vmem:[%s0 + $0x28] sm:$0x11]
  %v21 = vld [vmem:[%s1] sm:$0xf]
  %v22 = vld [vmem:[%s1 + $0x4] sm:$0xf]
  %v23 = vld [vmem:[%s1 + $0x8] sm:$0xf]
  %v24 = vld [vmem:[%s1 + $0xc] sm:$0xf]
  %v25 = vld [vmem:[%s1 + $0x10] sm:$0xf]
  %v26 = vld [vmem:[%s1 + $0x14] sm:$0xf]
  %v27 = vld [vmem:[%s1 + $0x18] sm:$0xf]
  %v28 = vld [vmem:[%s1 + $0x1c] sm:$0xf]
  %v29 = vld [vmem:[%s1 + $0x20] sm:$0xf]
  %v30 = vld [vmem:[%s1 + $0x24] sm:$0xf]
  %v31 = vld [vmem:[%s1 + $0x28] sm:$0xf]
  %v32 = vld [vmem:[%s1 + $0x2c] sm:$0xf]
  %v33 = vld [vmem:[%s1 + $0x30] sm:$0xf]
  %v34 = vld [vmem:[%s1 + $0x34] sm:$0xf]
  %v35 = vld [vmem:[%s1 + $0x38] sm:$0xf]
  %v36 = vld [vmem:[%s1 + $0x3c] sm:$0xf]
  %v37 = vld [vmem:[%s1 + $0x40] sm:$0xf]
  %v38 = vld [vmem:[%s1 + $0x44] sm:$0xf]
  %v39 = vld [vmem:[%s1 + $0x48] sm:$0xf]
  %v40 = vld [vmem:[%s1 + $0x4c] sm:$0xf]
  %v41 = vld [vmem:[%s1 + $0x50] sm:$0xf]
  %v42 = vld [vmem:[%s1 + $0x54] sm:$0xf]
  %v43 = vld [vmem:[%s1 + $0x58] sm:$0xf]
  %v44 = vld [vmem:[%s1 + $0x5c] sm:$0xf]
  %v45 = vld [vmem:[%s1 + $0x60] sm:$0xf]
  %v46 = vld [vmem:[%s1 + $0x64] sm:$0xf]
  %v47 = vld [vmem:[%s1 + $0x68] sm:$0xf]
  %v48 = vld [vmem:[%s1 + $0x6c] sm:$0xf]
  %v49 = vld [vmem:[%s1 + $0x70] sm:$0xf]
  %v50 = vld [vmem:[%s1 + $0x74] sm:$0xf]
  %v51 = vld [vmem:[%s1 + $0x78] sm:$0xf]
  %v52 = vld [vmem:[%s1 + $0x7c] sm:$0xf]
  %v53 = vld [vmem:[%s1 + $0x80] sm:$0xf]
  %v54 = vld [vmem:[%s1 + $0x84] sm:$0xf]
  %v55 = vld [vmem:[%s1 + $0x88] sm:$0xf]
  %v56 = vld [vmem:[%s1 + $0x8c] sm:$0xf]
  %v57 = vld [vmem:[%s1 + $0x90] sm:$0xf]
  %v58 = vld [vmem:[%s1 + $0x94] sm:$0xf]
  %v59 = vld [vmem:[%s1 + $0x98] sm:$0xf]
  %v60 = vld [vmem:[%s1 + $0x9c] sm:$0xf]
  %v61 = vld [vmem:[%s1 + $0xa0] sm:$0xf]
  %v62 = vld [vmem:[%s1 + $0xa4] sm:$0xf]
  %v63 = vld [vmem:[%s1 + $0xa8] sm:$0xf]
  %v64 = vld [vmem:[%s1 + $0xac] sm:$0xf]
  %v65 = vld [vmem:[%s1 + $0xb0] sm:$0xf]
  %v66 = vld [vmem:[%s1 + $0xb4] sm:$0xf]
  %v67 = vld [vmem:[%s1 + $0xb8] sm:$0xf]
  %v68 = vld [vmem:[%s1 + $0xbc] sm:$0xf]
  %v69 = vld [vmem:[%s1 + $0xc0] sm:$0xf]
  %v70 = vld [vmem:[%s1 + $0xc4] sm:$0xf]
  %v71 = vld [vmem:[%s1 + $0xc8] sm:$0xf]
  %v72 = vld [vmem:[%s1 + $0xcc] sm:$0xf]
  %v73 = vld [vmem:[%s1 + $0xd0] sm:$0xf]
  %v74 = vld [vmem:[%s1 + $0xd4] sm:$0xf]
  %v75 = vld [vmem:[%s1 + $0xd8] sm:$0xf]
  %v76 = vld [vmem:[%s1 + $0xdc] sm:$0xf]
  %v77 = vld [vmem:[%s1 + $0xe0] sm:$0xf]
  %v78 = vld [vmem:[%s1 + $0xe4] sm:$0xf]
  %v79 = vld [vmem:[%s1 + $0xe8] sm:$0xf]
  %v80 = vld [vmem:[%s1 + $0xec] sm:$0xf]
  %v81 = vld [vmem:[%s1 + $0xf0] sm:$0xf]
  %v82 = vld [vmem:[%s1 + $0xf4] sm:$0xf]
  %v83 = vld [vmem:[%s1 + $0xf8] sm:$0xf]
  %v84 = vld [vmem:[%s1 + $0xfc] sm:$0xf]
  %v85 = vld [vmem:[%s2] sm:$0x1]
  %v87 = vlaneseq
  %v88 = vshrl.u32 %v87, 7
  %v89 = vsub.s32 0, %v88
  %v90 = vrot.slane %v85, %v89
  %v98 = vunpack.c.l.b16 %v15
  %v99 = vunpack.c.h.b16 %v15
  %v100 = vunpack.c.l.b16 %v16
  %v101 = vunpack.c.h.b16 %v16
  %v102 = vunpack.c.l.b16 %v17
  %v103 = vunpack.c.h.b16 %v17
  %v104 = vunpack.c.l.b16 %v18
  %v105 = vunpack.c.h.b16 %v18
  %v106 = vunpack.c.l.b16 %v19
  %v107 = vunpack.c.h.b16 %v19
  %v108 = vunpack.c.l.b16 %v20
  %v109 = vunpack.c.h.b16 %v20
  %v110 = vpack.c.b16 %v102, %v98
  %v111 = vpack.c.b16 %v103, %v99
  %v112 = vpack.c.b16 %v104, %v100
  %v113 = vpack.c.b16 %v105, %v101
  %v114 = vpack.c.b16 %v106, %v106
  %v115 = vpack.c.b16 %v107, %v107
  %v116 = vpack.c.b16 %v108, %v108
  %v117 = vpack.c.b16 %v109, %v109
  %v190 = vunpack.c.l.b16 %v21
  %v191 = vunpack.c.l.b16 %v22
  %v192 = vunpack.c.l.b16 %v23
  %v193 = vunpack.c.l.b16 %v24
  %v194 = vunpack.c.l.b16 %v25
  %v195 = vunpack.c.l.b16 %v26
  %v196 = vunpack.c.l.b16 %v27
  %v197 = vunpack.c.l.b16 %v28
  %v198 = vunpack.c.l.b16 %v29
  %v199 = vunpack.c.l.b16 %v30
  %v200 = vunpack.c.l.b16 %v31
  %v201 = vunpack.c.l.b16 %v32
  %v202 = vunpack.c.l.b16 %v33
  %v203 = vunpack.c.l.b16 %v34
  %v204 = vunpack.c.l.b16 %v35
  %v205 = vunpack.c.l.b16 %v36
  %v206 = vunpack.c.l.b16 %v37
  %v207 = vunpack.c.l.b16 %v38
  %v208 = vunpack.c.l.b16 %v39
  %v209 = vunpack.c.l.b16 %v40
  %v210 = vunpack.c.l.b16 %v41
  %v211 = vunpack.c.l.b16 %v42
  %v212 = vunpack.c.l.b16 %v43
  %v213 = vunpack.c.l.b16 %v44
  %v214 = vunpack.c.l.b16 %v45
  %v215 = vunpack.c.l.b16 %v46
  %v216 = vunpack.c.l.b16 %v47
  %v217 = vunpack.c.l.b16 %v48
  %v218 = vunpack.c.l.b16 %v49
  %v219 = vunpack.c.l.b16 %v50
  %v220 = vunpack.c.l.b16 %v51
  %v221 = vunpack.c.l.b16 %v52
  %v222 = vunpack.c.l.b16 %v53
  %v223 = vunpack.c.l.b16 %v54
  %v224 = vunpack.c.l.b16 %v55
  %v225 = vunpack.c.l.b16 %v56
  %v226 = vunpack.c.l.b16 %v57
  %v227 = vunpack.c.l.b16 %v58
  %v228 = vunpack.c.l.b16 %v59
  %v229 = vunpack.c.l.b16 %v60
  %v230 = vunpack.c.l.b16 %v61
  %v231 = vunpack.c.l.b16 %v62
  %v232 = vunpack.c.l.b16 %v63
  %v233 = vunpack.c.l.b16 %v64
  %v234 = vunpack.c.l.b16 %v65
  %v235 = vunpack.c.l.b16 %v66
  %v236 = vunpack.c.l.b16 %v67
  %v237 = vunpack.c.l.b16 %v68
  %v238 = vunpack.c.l.b16 %v69
  %v239 = vunpack.c.l.b16 %v70
  %v240 = vunpack.c.l.b16 %v71
  %v241 = vunpack.c.l.b16 %v72
  %v242 = vunpack.c.l.b16 %v73
  %v243 = vunpack.c.l.b16 %v74
  %v244 = vunpack.c.l.b16 %v75
  %v245 = vunpack.c.l.b16 %v76
  %v246 = vunpack.c.l.b16 %v77
  %v247 = vunpack.c.l.b16 %v78
  %v248 = vunpack.c.l.b16 %v79
  %v249 = vunpack.c.l.b16 %v80
  %v250 = vunpack.c.l.b16 %v81
  %v251 = vunpack.c.l.b16 %v82
  %v252 = vunpack.c.l.b16 %v83
  %v253 = vunpack.c.l.b16 %v84
  %v254 = vpack.c.b16 %v191, %v190
  %v255 = vpack.c.b16 %v193, %v192
  %v256 = vpack.c.b16 %v195, %v194
  %v257 = vpack.c.b16 %v197, %v196
  %v258 = vpack.c.b16 %v199, %v198
  %v259 = vpack.c.b16 %v201, %v200
  %v260 = vpack.c.b16 %v203, %v202
  %v261 = vpack.c.b16 %v205, %v204
  %v262 = vpack.c.b16 %v207, %v206
  %v263 = vpack.c.b16 %v209, %v208
  %v264 = vpack.c.b16 %v211, %v210
  %v265 = vpack.c.b16 %v213, %v212
  %v266 = vpack.c.b16 %v215, %v214
  %v267 = vpack.c.b16 %v217, %v216
  %v268 = vpack.c.b16 %v219, %v218
  %v269 = vpack.c.b16 %v221, %v220
  %v270 = vpack.c.b16 %v223, %v222
  %v271 = vpack.c.b16 %v225, %v224
  %v272 = vpack.c.b16 %v227, %v226
  %v273 = vpack.c.b16 %v229, %v228
  %v274 = vpack.c.b16 %v231, %v230
  %v275 = vpack.c.b16 %v233, %v232
  %v276 = vpack.c.b16 %v235, %v234
  %v277 = vpack.c.b16 %v237, %v236
  %v278 = vpack.c.b16 %v239, %v238
  %v279 = vpack.c.b16 %v241, %v240
  %v280 = vpack.c.b16 %v243, %v242
  %v281 = vpack.c.b16 %v245, %v244
  %v282 = vpack.c.b16 %v247, %v246
  %v283 = vpack.c.b16 %v249, %v248
  %v284 = vpack.c.b16 %v251, %v250
  %v285 = vpack.c.b16 %v253, %v252
  %318 = vmatprep.subr.bf16.mxu0 0
  %319 = vmatpush1.bf16.msra.mxu0 %v254
  %320 = vmatprep.subr.bf16.mxu0 0
  %321 = vmatpush1.bf16.msra.mxu0 %v255
  %322 = vmatprep.subr.bf16.mxu0 0
  %323 = vmatpush1.bf16.msra.mxu0 %v256
  %324 = vmatprep.subr.bf16.mxu0 0
  %325 = vmatpush1.bf16.msra.mxu0 %v257
  %326 = vmatprep.subr.bf16.mxu0 0
  %327 = vmatpush1.bf16.msra.mxu0 %v258
  %328 = vmatprep.subr.bf16.mxu0 0
  %329 = vmatpush1.bf16.msra.mxu0 %v259
  %330 = vmatprep.subr.bf16.mxu0 0
  %331 = vmatpush1.bf16.msra.mxu0 %v260
  %332 = vmatprep.subr.bf16.mxu0 0
  %333 = vmatpush1.bf16.msra.mxu0 %v261
  %334 = vmatprep.subr.bf16.mxu0 0
  %335 = vmatpush1.bf16.msra.mxu0 %v262
  %336 = vmatprep.subr.bf16.mxu0 0
  %337 = vmatpush1.bf16.msra.mxu0 %v263
  %338 = vmatprep.subr.bf16.mxu0 0
  %339 = vmatpush1.bf16.msra.mxu0 %v264
  %340 = vmatprep.subr.bf16.mxu0 0
  %341 = vmatpush1.bf16.msra.mxu0 %v265
  %342 = vmatprep.subr.bf16.mxu0 0
  %343 = vmatpush1.bf16.msra.mxu0 %v266
  %344 = vmatprep.subr.bf16.mxu0 0
  %345 = vmatpush1.bf16.msra.mxu0 %v267
  %346 = vmatprep.subr.bf16.mxu0 0
  %347 = vmatpush1.bf16.msra.mxu0 %v268
  %348 = vmatprep.subr.bf16.mxu0 0
  %349 = vmatpush1.bf16.msra.mxu0 %v269
  %350 = vmatprep.mubr.bf16.mxu0 %v111
  %351 = vmatmul.mubr.bf16.gmra.mrb[0].mxu0 %v110
  %v352 = vpop.f32.mrb[0].mxu0
  %v353 = vadd.f32 %v90, %v352
  %v354 = vpop.f32.mrb[0].mxu0
  %v355 = vpop.f32.mrb[0].mxu0
  %v356 = vadd.f32 %v90, %v355
  %v357 = vpop.f32.mrb[0].mxu0
  %358 = vmatprep.mubr.bf16.mxu0 %v115
  %359 = vmatmul.mubr.bf16.gmra.mrb[0].mxu0 %v114
  %v360 = vpop.f32.mrb[0].mxu0
  %v361 = vadd.f32 %v90, %v360
  %v362 = vpop.f32.mrb[0].mxu0
  %v363 = vpop.f32.mrb[0].mxu0
  %v364 = vpop.f32.mrb[0].mxu0
  %365 = vdwg.mxu0
  %366 = vmatprep.subr.bf16.mxu0 0
  %367 = vmatpush1.bf16.msra.mxu0 %v270
  %368 = vmatprep.subr.bf16.mxu0 0
  %369 = vmatpush1.bf16.msra.mxu0 %v271
  %370 = vmatprep.subr.bf16.mxu0 0
  %371 = vmatpush1.bf16.msra.mxu0 %v272
  %372 = vmatprep.subr.bf16.mxu0 0
  %373 = vmatpush1.bf16.msra.mxu0 %v273
  %374 = vmatprep.subr.bf16.mxu0 0
  %375 = vmatpush1.bf16.msra.mxu0 %v274
  %376 = vmatprep.subr.bf16.mxu0 0
  %377 = vmatpush1.bf16.msra.mxu0 %v275
  %378 = vmatprep.subr.bf16.mxu0 0
  %379 = vmatpush1.bf16.msra.mxu0 %v276
  %380 = vmatprep.subr.bf16.mxu0 0
  %381 = vmatpush1.bf16.msra.mxu0 %v277
  %382 = vmatprep.subr.bf16.mxu0 0
  %383 = vmatpush1.bf16.msra.mxu0 %v278
  %384 = vmatprep.subr.bf16.mxu0 0
  %385 = vmatpush1.bf16.msra.mxu0 %v279
  %386 = vmatprep.subr.bf16.mxu0 0
  %387 = vmatpush1.bf16.msra.mxu0 %v280
  %388 = vmatprep.subr.bf16.mxu0 0
  %389 = vmatpush1.bf16.msra.mxu0 %v281
  %390 = vmatprep.subr.bf16.mxu0 0
  %391 = vmatpush1.bf16.msra.mxu0 %v282
  %392 = vmatprep.subr.bf16.mxu0 0
  %393 = vmatpush1.bf16.msra.mxu0 %v283
  %394 = vmatprep.subr.bf16.mxu0 0
  %395 = vmatpush1.bf16.msra.mxu0 %v284
  %396 = vmatprep.subr.bf16.mxu0 0
  %397 = vmatpush1.bf16.msra.mxu0 %v285
  %398 = vmatprep.mubr.bf16.mxu0 %v113
  %399 = vmatmul.mubr.bf16.gmra.mrb[0].mxu0 %v112
  %v400 = vpop.f32.mrb[0].mxu0
  %v401 = vadd.f32 %v353, %v400
  %v402 = vpop.f32.mrb[0].mxu0
  %v403 = vpop.f32.mrb[0].mxu0
  %v404 = vadd.f32 %v356, %v403
  %v405 = vpop.f32.mrb[0].mxu0
  %406 = vmatprep.mubr.bf16.mxu0 %v117
  %407 = vmatmul.mubr.bf16.gmra.mrb[0].mxu0 %v116
  %v408 = vpop.f32.mrb[0].mxu0
  %v409 = vadd.f32 %v361, %v408
  %v410 = vpop.f32.mrb[0].mxu0
  %v411 = vpop.f32.mrb[0].mxu0
  %v412 = vpop.f32.mrb[0].mxu0
  %413 = vdwg.mxu0
  %v414 = vmax.f32 %v401, 0.0
  %v415 = vmax.f32 %v404, 0.0
  %v416 = vmax.f32 %v409, 0.0
  %v417 = vpack.c.bf16 %v415, %v414
  %v418 = vpack.c.bf16 %v416, %v416
  %v421 = vunpack.c.l.b16 %v417
  %v422 = vunpack.c.h.b16 %v417
  %v423 = vunpack.c.l.b16 %v418
  %v424 = vpack.c.b16 %v421, %v421
  %v425 = vpack.c.b16 %v422, %v422
  %v426 = vpack.c.b16 %v423, %v423
  %430 = vst [vmem:[%s3] sm:$0xf] %v424
  %431 = vst [vmem:[%s3 + $0x4] sm:$0xf] %v425
  %432 = vst [vmem:[%s3 + $0x8] sm:$0x1] %v426
  // Predicated region
  $region14: #{dqn_forward.5} parent=0 // pred_check
    _
  $region15: #{dqn_forward.5} parent=0 // pred_check_branch
    %434 = sbr.rel (0) target = $region17
  $region16: #{dqn_forward.5} parent=0 // pred_region
    _
  $region17: #{dqn_forward.5} parent=0 // pred_fallthru
    _
  // Predicated region
  $region18: #{dqn_forward.5} parent=0 // pred_check
    _
  $region19: #{dqn_forward.5} parent=0 // pred_check_branch
    %436 = sbr.rel (0) target = $region21
  $region20: #{dqn_forward.5} parent=0 // pred_region
    _
  $region21: #{dqn_forward.5} parent=0 // pred_fallthru
    _

// kernel: dqn_forward.6
$region0: #{dqn_forward.6}
  #allocation0 [shape = 'u32[]', space=smem, size = 0x4, offset = 0x4, fixed_abs, tag = 'smem constant byte address 0x4 - core index']
  #allocation1 [shape = 'u32[144,128]{1,0:T(1,128)}', space=vmem, size = 0x12000, scoped, tag = 'internal scratch']
  %s0 = inlined_call_operand.vmem [shape: bf16[2,576], index: 0, kind: input, shape index: {}]
  %s1 = inlined_call_operand.vmem [shape: bf16[576,128], index: 1, kind: input, shape index: {}]
  %s2 = inlined_call_operand.vmem [shape: f32[1,128], index: 2, kind: input, shape index: {}]
  %s3 = inlined_call_operand.vmem [shape: bf16[2,128], index: 3, kind: output, shape index: {}]
  %s4 = sld [smem:[#allocation0]]
  $region22: #{dqn_forward.6} parent=0
    _
  %s6 = ssub.s32 1, %s4
  %s7 = scalar_select 0, %s6, %s4
  // Predicated region
  $region2: #{dqn_forward.6} parent=0 // pred_check
    _
  $region3: #{dqn_forward.6} parent=0 // pred_check_branch
    %9 = sbr.rel (0) target = $region5
  $region4: #{dqn_forward.6} parent=0 // pred_region
    _
  $region5: #{dqn_forward.6} parent=0 // pred_fallthru
    _
  // Predicated region
  $region6: #{dqn_forward.6} parent=0 // pred_check
    _
  $region7: #{dqn_forward.6} parent=0 // pred_check_branch
    %11 = sbr.rel (0) target = $region9
  $region8: #{dqn_forward.6} parent=0 // pred_region
    _
  $region9: #{dqn_forward.6} parent=0 // pred_fallthru
    _
  // Predicated region
  $region10: #{dqn_forward.6} parent=0 // pred_check
    _
  $region11: #{dqn_forward.6} parent=0 // pred_check_branch
    %13 = sbr.rel (0) target = $region13
  $region12: #{dqn_forward.6} parent=0 // pred_region
    _
  $region13: #{dqn_forward.6} parent=0 // pred_fallthru
    _
  %v15 = vld [vmem:[%s0] sm:$0x1f]
  %v16 = vld [vmem:[%s1] sm:$0xf]
  %v17 = vld [vmem:[%s1 + $0x4] sm:$0xf]
  %v18 = vld [vmem:[%s1 + $0x8] sm:$0xf]
  %v19 = vld [vmem:[%s1 + $0xc] sm:$0xf]
  %v20 = vld [vmem:[%s1 + $0x10] sm:$0xf]
  %v21 = vld [vmem:[%s1 + $0x14] sm:$0xf]
  %v22 = vld [vmem:[%s1 + $0x18] sm:$0xf]
  %v23 = vld [vmem:[%s1 + $0x1c] sm:$0xf]
  %v24 = vld [vmem:[%s1 + $0x20] sm:$0xf]
  %v25 = vld [vmem:[%s1 + $0x24] sm:$0xf]
  %v26 = vld [vmem:[%s1 + $0x28] sm:$0xf]
  %v27 = vld [vmem:[%s1 + $0x2c] sm:$0xf]
  %v28 = vld [vmem:[%s1 + $0x30] sm:$0xf]
  %v29 = vld [vmem:[%s1 + $0x34] sm:$0xf]
  %v30 = vld [vmem:[%s1 + $0x38] sm:$0xf]
  %v31 = vld [vmem:[%s1 + $0x3c] sm:$0xf]
  %v32 = vld [vmem:[%s1 + $0x40] sm:$0xf]
  %v33 = vld [vmem:[%s1 + $0x44] sm:$0xf]
  %v34 = vld [vmem:[%s1 + $0x48] sm:$0xf]
  %v35 = vld [vmem:[%s1 + $0x4c] sm:$0xf]
  %v36 = vld [vmem:[%s1 + $0x50] sm:$0xf]
  %v37 = vld [vmem:[%s1 + $0x54] sm:$0xf]
  %v38 = vld [vmem:[%s1 + $0x58] sm:$0xf]
  %v39 = vld [vmem:[%s1 + $0x5c] sm:$0xf]
  %v40 = vld [vmem:[%s1 + $0x60] sm:$0xf]
  %v41 = vld [vmem:[%s1 + $0x64] sm:$0xf]
  %v42 = vld [vmem:[%s1 + $0x68] sm:$0xf]
  %v43 = vld [vmem:[%s1 + $0x6c] sm:$0xf]
  %v44 = vld [vmem:[%s1 + $0x70] sm:$0xf]
  %v45 = vld [vmem:[%s1 + $0x74] sm:$0xf]
  %v46 = vld [vmem:[%s1 + $0x78] sm:$0xf]
  %v47 = vld [vmem:[%s1 + $0x7c] sm:$0xf]
  %v48 = vld [vmem:[%s1 + $0x80] sm:$0xf]
  %v49 = vld [vmem:[%s1 + $0x84] sm:$0xf]
  %v50 = vld [vmem:[%s1 + $0x88] sm:$0xf]
  %v51 = vld [vmem:[%s1 + $0x8c] sm:$0xf]
  %v52 = vld [vmem:[%s1 + $0x90] sm:$0xf]
  %v53 = vld [vmem:[%s1 + $0x94] sm:$0xf]
  %v54 = vld [vmem:[%s1 + $0x98] sm:$0xf]
  %v55 = vld [vmem:[%s1 + $0x9c] sm:$0xf]
  %v56 = vld [vmem:[%s1 + $0xa0] sm:$0xf]
  %v57 = vld [vmem:[%s1 + $0xa4] sm:$0xf]
  %v58 = vld [vmem:[%s1 + $0xa8] sm:$0xf]
  %v59 = vld [vmem:[%s1 + $0xac] sm:$0xf]
  %v60 = vld [vmem:[%s1 + $0xb0] sm:$0xf]
  %v61 = vld [vmem:[%s1 + $0xb4] sm:$0xf]
  %v62 = vld [vmem:[%s1 + $0xb8] sm:$0xf]
  %v63 = vld [vmem:[%s1 + $0xbc] sm:$0xf]
  %v64 = vld [vmem:[%s1 + $0xc0] sm:$0xf]
  %v65 = vld [vmem:[%s1 + $0xc4] sm:$0xf]
  %v66 = vld [vmem:[%s1 + $0xc8] sm:$0xf]
  %v67 = vld [vmem:[%s1 + $0xcc] sm:$0xf]
  %v68 = vld [vmem:[%s1 + $0xd0] sm:$0xf]
  %v69 = vld [vmem:[%s1 + $0xd4] sm:$0xf]
  %v70 = vld [vmem:[%s1 + $0xd8] sm:$0xf]
  %v71 = vld [vmem:[%s1 + $0xdc] sm:$0xf]
  %v72 = vld [vmem:[%s1 + $0xe0] sm:$0xf]
  %v73 = vld [vmem:[%s1 + $0xe4] sm:$0xf]
  %v74 = vld [vmem:[%s1 + $0xe8] sm:$0xf]
  %v75 = vld [vmem:[%s1 + $0xec] sm:$0xf]
  %v76 = vld [vmem:[%s1 + $0xf0] sm:$0xf]
  %v77 = vld [vmem:[%s1 + $0xf4] sm:$0xf]
  %v78 = vld [vmem:[%s1 + $0xf8] sm:$0xf]
  %v79 = vld [vmem:[%s1 + $0xfc] sm:$0xf]
  %v80 = vld [vmem:[%s1 + $0x100] sm:$0xf]
  %v81 = vld [vmem:[%s1 + $0x104] sm:$0xf]
  %v82 = vld [vmem:[%s1 + $0x108] sm:$0xf]
  %v83 = vld [vmem:[%s1 + $0x10c] sm:$0xf]
  %v84 = vld [vmem:[%s1 + $0x110] sm:$0xf]
  %v85 = vld [vmem:[%s1 + $0x114] sm:$0xf]
  %v86 = vld [vmem:[%s1 + $0x118] sm:$0xf]
  %v87 = vld [vmem:[%s1 + $0x11c] sm:$0xf]
  %v88 = vld [vmem:[%s2] sm:$0x1]
  %v90 = vlaneseq
  %v91 = vshrl.u32 %v90, 7
  %v92 = vsub.s32 0, %v91
  %v93 = vrot.slane %v88, %v92
  %v96 = vcombine.high %v15, %v15
  %v98 = vunpack.c.l.s4 1966171168
  %v99 = vunpack.c.0.s8 %v98
  %v100 = vlaneseq
  %v101 = vshrl.u32 %v100, 7
  %v102 = vsub.s32 %v99, %v101
  %v103 = vrot.slane %v15, %v102
  %v105 = vunpack.c.l.s4 1966171168
  %v106 = vunpack.c.0.s8 %v105
  %v107 = vlaneseq
  %v108 = vshrl.u32 %v107, 7
  %v109 = vsub.s32 %v106, %v108
  %v110 = vrot.slane %v96, %v109
  %v111 = vcombine.high %v103, %v103
  %v113 = vunpack.c.l.s4 1966171168
  %v114 = vunpack.c.0.s8 %v113
  %v115 = vlaneseq
  %v116 = vshrl.u32 %v115, 7
  %v117 = vsub.s32 %v114, %v116
  %v118 = vrot.slane %v103, %v117
  %v120 = vunpack.c.l.s4 1966171168
  %v121 = vunpack.c.0.s8 %v120
  %v122 = vlaneseq
  %v123 = vshrl.u32 %v122, 7
  %v124 = vsub.s32 %v121, %v123
  %v125 = vrot.slane %v110, %v124
  %v127 = vunpack.c.l.s4 1966171168
  %v128 = vunpack.c.0.s8 %v127
  %v129 = vlaneseq
  %v130 = vshrl.u32 %v129, 7
  %v131 = vsub.s32 %v128, %v130
  %v132 = vrot.slane %v111, %v131
  %v133 = vcombine.high %v118, %v118
  %v134 = vcombine.high %v132, %v132
  %v211 = vunpack.c.l.b16 %v16
  %v212 = vunpack.c.l.b16 %v17
  %v213 = vunpack.c.l.b16 %v18
  %v214 = vunpack.c.l.b16 %v19
  %v215 = vunpack.c.l.b16 %v20
  %v216 = vunpack.c.l.b16 %v21
  %v217 = vunpack.c.l.b16 %v22
  %v218 = vunpack.c.l.b16 %v23
  %v219 = vunpack.c.l.b16 %v24
  %v220 = vunpack.c.l.b16 %v25
  %v221 = vunpack.c.l.b16 %v26
  %v222 = vunpack.c.l.b16 %v27
  %v223 = vunpack.c.l.b16 %v28
  %v224 = vunpack.c.l.b16 %v29
  %v225 = vunpack.c.l.b16 %v30
  %v226 = vunpack.c.l.b16 %v31
  %v227 = vunpack.c.l.b16 %v32
  %v228 = vunpack.c.l.b16 %v33
  %v229 = vunpack.c.l.b16 %v34
  %v230 = vunpack.c.l.b16 %v35
  %v231 = vunpack.c.l.b16 %v36
  %v232 = vunpack.c.l.b16 %v37
  %v233 = vunpack.c.l.b16 %v38
  %v234 = vunpack.c.l.b16 %v39
  %v235 = vunpack.c.l.b16 %v40
  %v236 = vunpack.c.l.b16 %v41
  %v237 = vunpack.c.l.b16 %v42
  %v238 = vunpack.c.l.b16 %v43
  %v239 = vunpack.c.l.b16 %v44
  %v240 = vunpack.c.l.b16 %v45
  %v241 = vunpack.c.l.b16 %v46
  %v242 = vunpack.c.l.b16 %v47
  %v243 = vunpack.c.l.b16 %v48
  %v244 = vunpack.c.l.b16 %v49
  %v245 = vunpack.c.l.b16 %v50
  %v246 = vunpack.c.l.b16 %v51
  %v247 = vunpack.c.l.b16 %v52
  %v248 = vunpack.c.l.b16 %v53
  %v249 = vunpack.c.l.b16 %v54
  %v250 = vunpack.c.l.b16 %v55
  %v251 = vunpack.c.l.b16 %v56
  %v252 = vunpack.c.l.b16 %v57
  %v253 = vunpack.c.l.b16 %v58
  %v254 = vunpack.c.l.b16 %v59
  %v255 = vunpack.c.l.b16 %v60
  %v256 = vunpack.c.l.b16 %v61
  %v257 = vunpack.c.l.b16 %v62
  %v258 = vunpack.c.l.b16 %v63
  %v259 = vunpack.c.l.b16 %v64
  %v260 = vunpack.c.l.b16 %v65
  %v261 = vunpack.c.l.b16 %v66
  %v262 = vunpack.c.l.b16 %v67
  %v263 = vunpack.c.l.b16 %v68
  %v264 = vunpack.c.l.b16 %v69
  %v265 = vunpack.c.l.b16 %v70
  %v266 = vunpack.c.l.b16 %v71
  %v267 = vunpack.c.l.b16 %v72
  %v268 = vunpack.c.l.b16 %v73
  %v269 = vunpack.c.l.b16 %v74
  %v270 = vunpack.c.l.b16 %v75
  %v271 = vunpack.c.l.b16 %v76
  %v272 = vunpack.c.l.b16 %v77
  %v273 = vunpack.c.l.b16 %v78
  %v274 = vunpack.c.l.b16 %v79
  %v275 = vunpack.c.l.b16 %v80
  %v276 = vunpack.c.l.b16 %v81
  %v277 = vunpack.c.l.b16 %v82
  %v278 = vunpack.c.l.b16 %v83
  %v279 = vunpack.c.l.b16 %v84
  %v280 = vunpack.c.l.b16 %v85
  %v281 = vunpack.c.l.b16 %v86
  %v282 = vunpack.c.l.b16 %v87
  %v283 = vpack.c.b16 %v212, %v211
  %v284 = vpack.c.b16 %v214, %v213
  %v285 = vpack.c.b16 %v216, %v215
  %v286 = vpack.c.b16 %v218, %v217
  %v287 = vpack.c.b16 %v220, %v219
  %v288 = vpack.c.b16 %v222, %v221
  %v289 = vpack.c.b16 %v224, %v223
  %v290 = vpack.c.b16 %v226, %v225
  %v291 = vpack.c.b16 %v228, %v227
  %v292 = vpack.c.b16 %v230, %v229
  %v293 = vpack.c.b16 %v232, %v231
  %v294 = vpack.c.b16 %v234, %v233
  %v295 = vpack.c.b16 %v236, %v235
  %v296 = vpack.c.b16 %v238, %v237
  %v297 = vpack.c.b16 %v240, %v239
  %v298 = vpack.c.b16 %v242, %v241
  %v299 = vpack.c.b16 %v244, %v243
  %v300 = vpack.c.b16 %v246, %v245
  %v301 = vpack.c.b16 %v248, %v247
  %v302 = vpack.c.b16 %v250, %v249
  %v303 = vpack.c.b16 %v252, %v251
  %v304 = vpack.c.b16 %v254, %v253
  %v305 = vpack.c.b16 %v256, %v255
  %v306 = vpack.c.b16 %v258, %v257
  %v307 = vpack.c.b16 %v260, %v259
  %v308 = vpack.c.b16 %v262, %v261
  %v309 = vpack.c.b16 %v264, %v263
  %v310 = vpack.c.b16 %v266, %v265
  %v311 = vpack.c.b16 %v268, %v267
  %v312 = vpack.c.b16 %v270, %v269
  %v313 = vpack.c.b16 %v272, %v271
  %v314 = vpack.c.b16 %v274, %v273
  %v315 = vpack.c.b16 %v276, %v275
  %v316 = vpack.c.b16 %v278, %v277
  %v317 = vpack.c.b16 %v280, %v279
  %v318 = vpack.c.b16 %v282, %v281
  %vm355 = vcmask 523264
  %v357 = vsel %vm355, %v125, 0
  %359 = vmatprep.subr.bf16.mxu0 0
  %360 = vmatpush1.bf16.msra.mxu0 %v283
  %361 = vmatprep.subr.bf16.mxu0 0
  %362 = vmatpush1.bf16.msra.mxu0 %v284
  %363 = vmatprep.subr.bf16.mxu0 0
  %364 = vmatpush1.bf16.msra.mxu0 %v285
  %365 = vmatprep.subr.bf16.mxu0 0
  %366 = vmatpush1.bf16.msra.mxu0 %v286
  %367 = vmatprep.subr.bf16.mxu0 0
  %368 = vmatpush1.bf16.msra.mxu0 %v287
  %369 = vmatprep.subr.bf16.mxu0 0
  %370 = vmatpush1.bf16.msra.mxu0 %v288
  %371 = vmatprep.subr.bf16.mxu0 0
  %372 = vmatpush1.bf16.msra.mxu0 %v289
  %373 = vmatprep.subr.bf16.mxu0 0
  %374 = vmatpush1.bf16.msra.mxu0 %v290
  %375 = vmatprep.subr.bf16.mxu0 0
  %376 = vmatpush1.bf16.msra.mxu0 %v291
  %377 = vmatprep.subr.bf16.mxu0 0
  %378 = vmatpush1.bf16.msra.mxu0 %v292
  %379 = vmatprep.subr.bf16.mxu0 0
  %380 = vmatpush1.bf16.msra.mxu0 %v293
  %381 = vmatprep.subr.bf16.mxu0 0
  %382 = vmatpush1.bf16.msra.mxu0 %v294
  %383 = vmatprep.subr.bf16.mxu0 0
  %384 = vmatpush1.bf16.msra.mxu0 %v295
  %385 = vmatprep.subr.bf16.mxu0 0
  %386 = vmatpush1.bf16.msra.mxu0 %v296
  %387 = vmatprep.subr.bf16.mxu0 0
  %388 = vmatpush1.bf16.msra.mxu0 %v297
  %389 = vmatprep.subr.bf16.mxu0 0
  %390 = vmatpush1.bf16.msra.mxu0 %v298
  %391 = vmatprep.mubr.bf16.mxu0 %v132
  %392 = vmatmul.mubr.bf16.gmra.mrb[0].mxu0 %v118
  %v393 = vpop.f32.mrb[0].mxu0
  %v394 = vadd.f32 %v93, %v393
  %v395 = vpop.f32.mrb[0].mxu0
  %v396 = vpop.f32.mrb[0].mxu0
  %v397 = vpop.f32.mrb[0].mxu0
  %398 = vdwg.mxu0
  %399 = vmatprep.subr.bf16.mxu0 0
  %400 = vmatpush1.bf16.msra.mxu0 %v299
  %401 = vmatprep.subr.bf16.mxu0 0
  %402 = vmatpush1.bf16.msra.mxu0 %v300
  %403 = vmatprep.subr.bf16.mxu0 0
  %404 = vmatpush1.bf16.msra.mxu0 %v301
  %405 = vmatprep.subr.bf16.mxu0 0
  %406 = vmatpush1.bf16.msra.mxu0 %v302
  %407 = vmatprep.subr.bf16.mxu0 0
  %408 = vmatpush1.bf16.msra.mxu0 %v303
  %409 = vmatprep.subr.bf16.mxu0 0
  %410 = vmatpush1.bf16.msra.mxu0 %v304
  %411 = vmatprep.subr.bf16.mxu0 0
  %412 = vmatpush1.bf16.msra.mxu0 %v305
  %413 = vmatprep.subr.bf16.mxu0 0
  %414 = vmatpush1.bf16.msra.mxu0 %v306
  %415 = vmatprep.subr.bf16.mxu0 0
  %416 = vmatpush1.bf16.msra.mxu0 %v307
  %417 = vmatprep.subr.bf16.mxu0 0
  %418 = vmatpush1.bf16.msra.mxu0 %v308
  %419 = vmatprep.subr.bf16.mxu0 0
  %420 = vmatpush1.bf16.msra.mxu0 %v309
  %421 = vmatprep.subr.bf16.mxu0 0
  %422 = vmatpush1.bf16.msra.mxu0 %v310
  %423 = vmatprep.subr.bf16.mxu0 0
  %424 = vmatpush1.bf16.msra.mxu0 %v311
  %425 = vmatprep.subr.bf16.mxu0 0
  %426 = vmatpush1.bf16.msra.mxu0 %v312
  %427 = vmatprep.subr.bf16.mxu0 0
  %428 = vmatpush1.bf16.msra.mxu0 %v313
  %429 = vmatprep.subr.bf16.mxu0 0
  %430 = vmatpush1.bf16.msra.mxu0 %v314
  %431 = vmatprep.mubr.bf16.mxu0 %v134
  %432 = vmatmul.mubr.bf16.gmra.mrb[0].mxu0 %v133
  %v433 = vpop.f32.mrb[0].mxu0
  %v434 = vadd.f32 %v394, %v433
  %v435 = vpop.f32.mrb[0].mxu0
  %v436 = vpop.f32.mrb[0].mxu0
  %v437 = vpop.f32.mrb[0].mxu0
  %438 = vdwg.mxu0
  %439 = vmatprep.subr.bf16.mxu0 0
  %440 = vmatpush1.bf16.msra.mxu0 %v315
  %441 = vmatprep.subr.bf16.mxu0 0
  %442 = vmatpush1.bf16.msra.mxu0 %v316
  %443 = vmatprep.subr.bf16.mxu0 0
  %444 = vmatpush1.bf16.msra.mxu0 %v317
  %445 = vmatprep.subr.bf16.mxu0 0
  %446 = vmatpush1.bf16.msra.mxu0 %v318
  %447 = vmatprep.subr.bf16.mxu0 0
  %448 = vmatpush1.bf16.msra.mxu0 0
  %449 = vmatprep.subr.bf16.mxu0 0
  %450 = vmatpush1.bf16.msra.mxu0 0
  %451 = vmatprep.subr.bf16.mxu0 0
  %452 = vmatpush1.bf16.msra.mxu0 0
  %453 = vmatprep.subr.bf16.mxu0 0
  %454 = vmatpush1.bf16.msra.mxu0 0
  %455 = vmatprep.subr.bf16.mxu0 0
  %456 = vmatpush1.bf16.msra.mxu0 0
  %457 = vmatprep.subr.bf16.mxu0 0
  %458 = vmatpush1.bf16.msra.mxu0 0
  %459 = vmatprep.subr.bf16.mxu0 0
  %460 = vmatpush1.bf16.msra.mxu0 0
  %461 = vmatprep.subr.bf16.mxu0 0
  %462 = vmatpush1.bf16.msra.mxu0 0
  %463 = vmatprep.subr.bf16.mxu0 0
  %464 = vmatpush1.bf16.msra.mxu0 0
  %465 = vmatprep.subr.bf16.mxu0 0
  %466 = vmatpush1.bf16.msra.mxu0 0
  %467 = vmatprep.subr.bf16.mxu0 0
  %468 = vmatpush1.bf16.msra.mxu0 0
  %469 = vmatprep.subr.bf16.mxu0 0
  %470 = vmatpush1.bf16.msra.mxu0 0
  %471 = vmatprep.mubr.bf16.mxu0 0
  %472 = vmatmul.mubr.bf16.gmra.mrb[0].mxu0 %v357
  %v473 = vpop.f32.mrb[0].mxu0
  %v474 = vadd.f32 %v434, %v473
  %v475 = vpop.f32.mrb[0].mxu0
  %v476 = vpop.f32.mrb[0].mxu0
  %v477 = vpop.f32.mrb[0].mxu0
  %478 = vdwg.mxu0
  %v479 = vmax.f32 %v474, 0.0
  %v480 = vpack.c.bf16 %v479, %v479
  %481 = vst [vmem:[%s3] sm:$0x1] %v480
  // Predicated region
  $region14: #{dqn_forward.6} parent=0 // pred_check
    _
  $region15: #{dqn_forward.6} parent=0 // pred_check_branch
    %483 = sbr.rel (0) target = $region17
  $region16: #{dqn_forward.6} parent=0 // pred_region
    _
  $region17: #{dqn_forward.6} parent=0 // pred_fallthru
    _
  // Predicated region
  $region18: #{dqn_forward.6} parent=0 // pred_check
    _
  $region19: #{dqn_forward.6} parent=0 // pred_check_branch
    %485 = sbr.rel (0) target = $region21
  $region20: #{dqn_forward.6} parent=0 // pred_region
    _
  $region21: #{dqn_forward.6} parent=0 // pred_fallthru
    _

// kernel: dqn_forward.7
$region0: #{dqn_forward.7}
  #allocation0 [shape = 'u32[]', space=smem, size = 0x4, offset = 0x4, fixed_abs, tag = 'smem constant byte address 0x4 - core index']
  #allocation1 [shape = 'u32[144,128]{1,0:T(1,128)}', space=vmem, size = 0x12000, scoped, tag = 'internal scratch']
  %s0 = inlined_call_operand.vmem [shape: bf16[2,64], index: 0, kind: input, shape index: {}]
  %s1 = inlined_call_operand.vmem [shape: bf16[64,512], index: 1, kind: input, shape index: {}]
  %s2 = inlined_call_operand.vmem [shape: f32[1,512], index: 2, kind: input, shape index: {}]
  %s3 = inlined_call_operand.vmem [shape: bf16[512,128], index: 3, kind: input, shape index: {}]
  %s4 = inlined_call_operand.vmem [shape: f32[1,128], index: 4, kind: input, shape index: {}]
  %s5 = inlined_call_operand.hbm [shape: f32[2,128], index: 5, kind: output, shape index: {}]
  %s6 = sld [smem:[#allocation0]]
  $region30: #{dqn_forward.7} parent=0
    _
  %s8 = ssub.s32 1, %s6
  %s9 = scalar_select 0, %s8, %s6
  $region1: #{dqn_forward.7} parent=0
    #allocation2 [shape = 'u8[1024]{0}', space=vmem, size = 0x400, scoped, tag = 'output window, operand 0, single buffered']
    #allocation3 [shape = 's32[1]{0}', space=sflag, size = 0x4, scoped, tag = 'scoped memory for dqn_forward.7']
    %10 = vsyncpa [#allocation3], 0
    // Predicated region
    $region2: #{dqn_forward.7} parent=1 // pred_check
      _
    $region3: #{dqn_forward.7} parent=1 // pred_check_branch
      %12 = sbr.rel (0) target = $region5
    $region4: #{dqn_forward.7} parent=1 // pred_region
      _
    $region5: #{dqn_forward.7} parent=1 // pred_fallthru
      _
    // Predicated region
    $region6: #{dqn_forward.7} parent=1 // pred_check
      _
    $region7: #{dqn_forward.7} parent=1 // pred_check_branch
      %14 = sbr.rel (0) target = $region9
    $region8: #{dqn_forward.7} parent=1 // pred_region
      _
    $region9: #{dqn_forward.7} parent=1 // pred_fallthru
      _
    // Predicated region
    $region10: #{dqn_forward.7} parent=1 // pred_check
      _
    $region11: #{dqn_forward.7} parent=1 // pred_check_branch
      %16 = sbr.rel (0) target = $region13
    $region12: #{dqn_forward.7} parent=1 // pred_region
      _
    $region13: #{dqn_forward.7} parent=1 // pred_fallthru
      _
    // Predicated region
    $region14: #{dqn_forward.7} parent=1 // pred_check
      _
    $region15: #{dqn_forward.7} parent=1 // pred_check_branch
      %18 = sbr.rel (0) target = $region17
    $region16: #{dqn_forward.7} parent=1 // pred_region
      _
    $region17: #{dqn_forward.7} parent=1 // pred_fallthru
      _
    // Predicated region
    $region18: #{dqn_forward.7} parent=1 // pred_check
      _
    $region19: #{dqn_forward.7} parent=1 // pred_check_branch
      %20 = sbr.rel (0) target = $region21
    $region20: #{dqn_forward.7} parent=1 // pred_region
      _
    $region21: #{dqn_forward.7} parent=1 // pred_fallthru
      _
    %v22 = vld [vmem:[%s0] sm:$0x1]
    %v23 = vld [vmem:[%s1] sm:$0xff]
    %v24 = vld [vmem:[%s1 + $0x8] sm:$0xff]
    %v25 = vld [vmem:[%s1 + $0x10] sm:$0xff]
    %v26 = vld [vmem:[%s1 + $0x18] sm:$0xff]
    %v27 = vld [vmem:[%s1 + $0x20] sm:$0xff]
    %v28 = vld [vmem:[%s1 + $0x28] sm:$0xff]
    %v29 = vld [vmem:[%s1 + $0x30] sm:$0xff]
    %v30 = vld [vmem:[%s1 + $0x38] sm:$0xff]
    %v31 = vld [vmem:[%s1 + $0x40] sm:$0xff]
    %v32 = vld [vmem:[%s1 + $0x48] sm:$0xff]
    %v33 = vld [vmem:[%s1 + $0x50] sm:$0xff]
    %v34 = vld [vmem:[%s1 + $0x58] sm:$0xff]
    %v35 = vld [vmem:[%s1 + $0x60] sm:$0xff]
    %v36 = vld [vmem:[%s1 + $0x68] sm:$0xff]
    %v37 = vld [vmem:[%s1 + $0x70] sm:$0xff]
    %v38 = vld [vmem:[%s1 + $0x78] sm:$0xff]
    %v39 = vld [vmem:[%s2] sm:$0xf]
    %v41 = vlaneseq
    %v42 = vshrl.u32 %v41, 7
    %v43 = vsub.s32 0, %v42
    %v44 = vrot.slane %v39, %v43
    %v45 = vlaneseq
    %v46 = vshrl.u32 %v45, 7
    %v47 = vsub.s32 1, %v46
    %v48 = vrot.slane %v39, %v47
    %v49 = vlaneseq
    %v50 = vshrl.u32 %v49, 7
    %v51 = vsub.s32 2, %v50
    %v52 = vrot.slane %v39, %v51
    %v53 = vlaneseq
    %v54 = vshrl.u32 %v53, 7
    %v55 = vsub.s32 3, %v54
    %v56 = vrot.slane %v39, %v55
    %v77 = vunpack.c.l.b16 %v23
    %v78 = vunpack.c.h.b16 %v23
    %v79 = vunpack.c.l.b16 %v24
    %v80 = vunpack.c.h.b16 %v24
    %v81 = vunpack.c.l.b16 %v25
    %v82 = vunpack.c.h.b16 %v25
    %v83 = vunpack.c.l.b16 %v26
    %v84 = vunpack.c.h.b16 %v26
    %v85 = vunpack.c.l.b16 %v27
    %v86 = vunpack.c.h.b16 %v27
    %v87 = vunpack.c.l.b16 %v28
    %v88 = vunpack.c.h.b16 %v28
    %v89 = vunpack.c.l.b16 %v29
    %v90 = vunpack.c.h.b16 %v29
    %v91 = vunpack.c.l.b16 %v30
    %v92 = vunpack.c.h.b16 %v30
    %v93 = vunpack.c.l.b16 %v31
    %v94 = vunpack.c.h.b16 %v31
    %v95 = vunpack.c.l.b16 %v32
    %v96 = vunpack.c.h.b16 %v32
    %v97 = vunpack.c.l.b16 %v33
    %v98 = vunpack.c.h.b16 %v33
    %v99 = vunpack.c.l.b16 %v34
    %v100 = vunpack.c.h.b16 %v34
    %v101 = vunpack.c.l.b16 %v35
    %v102 = vunpack.c.h.b16 %v35
    %v103 = vunpack.c.l.b16 %v36
    %v104 = vunpack.c.h.b16 %v36
    %v105 = vunpack.c.l.b16 %v37
    %v106 = vunpack.c.h.b16 %v37
    %v107 = vunpack.c.l.b16 %v38
    %v108 = vunpack.c.h.b16 %v38
    %v109 = vpack.c.b16 %v81, %v77
    %v110 = vpack.c.b16 %v82, %v78
    %v111 = vpack.c.b16 %v83, %v79
    %v112 = vpack.c.b16 %v84, %v80
    %v113 = vpack.c.b16 %v89, %v85
    %v114 = vpack.c.b16 %v90, %v86
    %v115 = vpack.c.b16 %v91, %v87
    %v116 = vpack.c.b16 %v92, %v88
    %v117 = vpack.c.b16 %v97, %v93
    %v118 = vpack.c.b16 %v98, %v94
    %v119 = vpack.c.b16 %v99, %v95
    %v120 = vpack.c.b16 %v100, %v96
    %v121 = vpack.c.b16 %v105, %v101
    %v122 = vpack.c.b16 %v106, %v102
    %v123 = vpack.c.b16 %v107, %v103
    %v124 = vpack.c.b16 %v108, %v104
    %vm141 = vcmask 523264
    %v143 = vsel %vm141, %v22, 0
    %145 = vmatprep.subr.bf16.mxu0 %v110
    %146 = vmatpush1.bf16.msra.mxu0 %v109
    %147 = vmatprep.subr.bf16.mxu0 %v114
    %148 = vmatpush1.bf16.msra.mxu0 %v113
    %149 = vmatprep.subr.bf16.mxu0 %v118
    %150 = vmatpush1.bf16.msra.mxu0 %v117
    %151 = vmatprep.subr.bf16.mxu0 %v122
    %152 = vmatpush1.bf16.msra.mxu0 %v121
    %153 = vmatprep.subr.bf16.mxu0 0
    %154 = vmatpush1.bf16.msra.mxu0 0
    %155 = vmatprep.subr.bf16.mxu0 0
    %156 = vmatpush1.bf16.msra.mxu0 0
    %157 = vmatprep.subr.bf16.mxu0 0
    %158 = vmatpush1.bf16.msra.mxu0 0
    %159 = vmatprep.subr.bf16.mxu0 0
    %160 = vmatpush1.bf16.msra.mxu0 0
    %161 = vmatprep.subr.bf16.mxu0 0
    %162 = vmatpush1.bf16.msra.mxu0 0
    %163 = vmatprep.subr.bf16.mxu0 0
    %164 = vmatpush1.bf16.msra.mxu0 0
    %165 = vmatprep.subr.bf16.mxu0 0
    %166 = vmatpush1.bf16.msra.mxu0 0
    %167 = vmatprep.subr.bf16.mxu0 0
    %168 = vmatpush1.bf16.msra.mxu0 0
    %169 = vmatprep.subr.bf16.mxu0 0
    %170 = vmatpush1.bf16.msra.mxu0 0
    %171 = vmatprep.subr.bf16.mxu0 0
    %172 = vmatpush1.bf16.msra.mxu0 0
    %173 = vmatprep.subr.bf16.mxu0 0
    %174 = vmatpush1.bf16.msra.mxu0 0
    %175 = vmatprep.subr.bf16.mxu0 0
    %176 = vmatpush1.bf16.msra.mxu0 0
    %177 = vmatprep.mubr.bf16.mxu0 0
    %178 = vmatmul.mubr.bf16.gmra.mrb[0].mxu0 %v143
    %v179 = vpop.f32.mrb[0].mxu0
    %v180 = vadd.f32 %v44, %v179
    %v181 = vpop.f32.mrb[0].mxu0
    %v182 = vadd.f32 %v48, %v181
    %v183 = vpop.f32.mrb[0].mxu0
    %v184 = vpop.f32.mrb[0].mxu0
    %185 = vdwg.mxu0
    %186 = vmatprep.subr.bf16.mxu0 %v112
    %187 = vmatpush1.bf16.msra.mxu0 %v111
    %188 = vmatprep.subr.bf16.mxu0 %v116
    %189 = vmatpush1.bf16.msra.mxu0 %v115
    %190 = vmatprep.subr.bf16.mxu0 %v120
    %191 = vmatpush1.bf16.msra.mxu0 %v119
    %192 = vmatprep.subr.bf16.mxu0 %v124
    %193 = vmatpush1.bf16.msra.mxu0 %v123
    %194 = vmatprep.subr.bf16.mxu0 0
    %195 = vmatpush1.bf16.msra.mxu0 0
    %196 = vmatprep.subr.bf16.mxu0 0
    %197 = vmatpush1.bf16.msra.mxu0 0
    %198 = vmatprep.subr.bf16.mxu0 0
    %199 = vmatpush1.bf16.msra.mxu0 0
    %200 = vmatprep.subr.bf16.mxu0 0
    %201 = vmatpush1.bf16.msra.mxu0 0
    %202 = vmatprep.subr.bf16.mxu0 0
    %203 = vmatpush1.bf16.msra.mxu0 0
    %204 = vmatprep.subr.bf16.mxu0 0
    %205 = vmatpush1.bf16.msra.mxu0 0
    %206 = vmatprep.subr.bf16.mxu0 0
    %207 = vmatpush1.bf16.msra.mxu0 0
    %208 = vmatprep.subr.bf16.mxu0 0
    %209 = vmatpush1.bf16.msra.mxu0 0
    %210 = vmatprep.subr.bf16.mxu0 0
    %211 = vmatpush1.bf16.msra.mxu0 0
    %212 = vmatprep.subr.bf16.mxu0 0
    %213 = vmatpush1.bf16.msra.mxu0 0
    %214 = vmatprep.subr.bf16.mxu0 0
    %215 = vmatpush1.bf16.msra.mxu0 0
    %216 = vmatprep.subr.bf16.mxu0 0
    %217 = vmatpush1.bf16.msra.mxu0 0
    %218 = vmatprep.mubr.bf16.mxu0 0
    %219 = vmatmul.mubr.bf16.gmra.mrb[0].mxu0 %v143
    %v220 = vpop.f32.mrb[0].mxu0
    %v221 = vadd.f32 %v52, %v220
    %v222 = vpop.f32.mrb[0].mxu0
    %v223 = vadd.f32 %v56, %v222
    %v224 = vpop.f32.mrb[0].mxu0
    %v225 = vpop.f32.mrb[0].mxu0
    %226 = vdwg.mxu0
    %v227 = vmax.f32 %v180, 0.0
    %v228 = vmax.f32 %v182, 0.0
    %v229 = vmax.f32 %v221, 0.0
    %v230 = vmax.f32 %v223, 0.0
    %v231 = vpack.c.bf16 %v227, %v227
    %v232 = vpack.c.bf16 %v228, %v228
    %v233 = vpack.c.bf16 %v229, %v229
    %v234 = vpack.c.bf16 %v230, %v230
    %v235 = vld [vmem:[%s3] sm:$0xf]
    %v236 = vld [vmem:[%s3 + $0x4] sm:$0xf]
    %v237 = vld [vmem:[%s3 + $0x8] sm:$0xf]
    %v238 = vld [vmem:[%s3 + $0xc] sm:$0xf]
    %v239 = vld [vmem:[%s3 + $0x10] sm:$0xf]
    %v240 = vld [vmem:[%s3 + $0x14] sm:$0xf]
    %v241 = vld [vmem:[%s3 + $0x18] sm:$0xf]
    %v242 = vld [vmem:[%s3 + $0x1c] sm:$0xf]
    %v243 = vld [vmem:[%s3 + $0x20] sm:$0xf]
    %v244 = vld [vmem:[%s3 + $0x24] sm:$0xf]
    %v245 = vld [vmem:[%s3 + $0x28] sm:$0xf]
    %v246 = vld [vmem:[%s3 + $0x2c] sm:$0xf]
    %v247 = vld [vmem:[%s3 + $0x30] sm:$0xf]
    %v248 = vld [vmem:[%s3 + $0x34] sm:$0xf]
    %v249 = vld [vmem:[%s3 + $0x38] sm:$0xf]
    %v250 = vld [vmem:[%s3 + $0x3c] sm:$0xf]
    %v251 = vld [vmem:[%s3 + $0x40] sm:$0xf]
    %v252 = vld [vmem:[%s3 + $0x44] sm:$0xf]
    %v253 = vld [vmem:[%s3 + $0x48] sm:$0xf]
    %v254 = vld [vmem:[%s3 + $0x4c] sm:$0xf]
    %v255 = vld [vmem:[%s3 + $0x50] sm:$0xf]
    %v256 = vld [vmem:[%s3 + $0x54] sm:$0xf]
    %v257 = vld [vmem:[%s3 + $0x58] sm:$0xf]
    %v258 = vld [vmem:[%s3 + $0x5c] sm:$0xf]
    %v259 = vld [vmem:[%s3 + $0x60] sm:$0xf]
    %v260 = vld [vmem:[%s3 + $0x64] sm:$0xf]
    %v261 = vld [vmem:[%s3 + $0x68] sm:$0xf]
    %v262 = vld [vmem:[%s3 + $0x6c] sm:$0xf]
    %v263 = vld [vmem:[%s3 + $0x70] sm:$0xf]
    %v264 = vld [vmem:[%s3 + $0x74] sm:$0xf]
    %v265 = vld [vmem:[%s3 + $0x78] sm:$0xf]
    %v266 = vld [vmem:[%s3 + $0x7c] sm:$0xf]
    %v267 = vld [vmem:[%s3 + $0x80] sm:$0xf]
    %v268 = vld [vmem:[%s3 + $0x84] sm:$0xf]
    %v269 = vld [vmem:[%s3 + $0x88] sm:$0xf]
    %v270 = vld [vmem:[%s3 + $0x8c] sm:$0xf]
    %v271 = vld [vmem:[%s3 + $0x90] sm:$0xf]
    %v272 = vld [vmem:[%s3 + $0x94] sm:$0xf]
    %v273 = vld [vmem:[%s3 + $0x98] sm:$0xf]
    %v274 = vld [vmem:[%s3 + $0x9c] sm:$0xf]
    %v275 = vld [vmem:[%s3 + $0xa0] sm:$0xf]
    %v276 = vld [vmem:[%s3 + $0xa4] sm:$0xf]
    %v277 = vld [vmem:[%s3 + $0xa8] sm:$0xf]
    %v278 = vld [vmem:[%s3 + $0xac] sm:$0xf]
    %v279 = vld [vmem:[%s3 + $0xb0] sm:$0xf]
    %v280 = vld [vmem:[%s3 + $0xb4] sm:$0xf]
    %v281 = vld [vmem:[%s3 + $0xb8] sm:$0xf]
    %v282 = vld [vmem:[%s3 + $0xbc] sm:$0xf]
    %v283 = vld [vmem:[%s3 + $0xc0] sm:$0xf]
    %v284 = vld [vmem:[%s3 + $0xc4] sm:$0xf]
    %v285 = vld [vmem:[%s3 + $0xc8] sm:$0xf]
    %v286 = vld [vmem:[%s3 + $0xcc] sm:$0xf]
    %v287 = vld [vmem:[%s3 + $0xd0] sm:$0xf]
    %v288 = vld [vmem:[%s3 + $0xd4] sm:$0xf]
    %v289 = vld [vmem:[%s3 + $0xd8] sm:$0xf]
    %v290 = vld [vmem:[%s3 + $0xdc] sm:$0xf]
    %v291 = vld [vmem:[%s3 + $0xe0] sm:$0xf]
    %v292 = vld [vmem:[%s3 + $0xe4] sm:$0xf]
    %v293 = vld [vmem:[%s3 + $0xe8] sm:$0xf]
    %v294 = vld [vmem:[%s3 + $0xec] sm:$0xf]
    %v295 = vld [vmem:[%s3 + $0xf0] sm:$0xf]
    %v296 = vld [vmem:[%s3 + $0xf4] sm:$0xf]
    %v297 = vld [vmem:[%s3 + $0xf8] sm:$0xf]
    %v298 = vld [vmem:[%s3 + $0xfc] sm:$0xf]
    %v299 = vld [vmem:[%s4] sm:$0x1]
    %v301 = vlaneseq
    %v302 = vshrl.u32 %v301, 7
    %v303 = vsub.s32 0, %v302
    %v304 = vrot.slane %v299, %v303
    %v370 = vunpack.c.l.b16 %v235
    %v371 = vunpack.c.l.b16 %v236
    %v372 = vunpack.c.l.b16 %v237
    %v373 = vunpack.c.l.b16 %v238
    %v374 = vunpack.c.l.b16 %v239
    %v375 = vunpack.c.l.b16 %v240
    %v376 = vunpack.c.l.b16 %v241
    %v377 = vunpack.c.l.b16 %v242
    %v378 = vunpack.c.l.b16 %v243
    %v379 = vunpack.c.l.b16 %v244
    %v380 = vunpack.c.l.b16 %v245
    %v381 = vunpack.c.l.b16 %v246
    %v382 = vunpack.c.l.b16 %v247
    %v383 = vunpack.c.l.b16 %v248
    %v384 = vunpack.c.l.b16 %v249
    %v385 = vunpack.c.l.b16 %v250
    %v386 = vunpack.c.l.b16 %v251
    %v387 = vunpack.c.l.b16 %v252
    %v388 = vunpack.c.l.b16 %v253
    %v389 = vunpack.c.l.b16 %v254
    %v390 = vunpack.c.l.b16 %v255
    %v391 = vunpack.c.l.b16 %v256
    %v392 = vunpack.c.l.b16 %v257
    %v393 = vunpack.c.l.b16 %v258
    %v394 = vunpack.c.l.b16 %v259
    %v395 = vunpack.c.l.b16 %v260
    %v396 = vunpack.c.l.b16 %v261
    %v397 = vunpack.c.l.b16 %v262
    %v398 = vunpack.c.l.b16 %v263
    %v399 = vunpack.c.l.b16 %v264
    %v400 = vunpack.c.l.b16 %v265
    %v401 = vunpack.c.l.b16 %v266
    %v402 = vunpack.c.l.b16 %v267
    %v403 = vunpack.c.l.b16 %v268
    %v404 = vunpack.c.l.b16 %v269
    %v405 = vunpack.c.l.b16 %v270
    %v406 = vunpack.c.l.b16 %v271
    %v407 = vunpack.c.l.b16 %v272
    %v408 = vunpack.c.l.b16 %v273
    %v409 = vunpack.c.l.b16 %v274
    %v410 = vunpack.c.l.b16 %v275
    %v411 = vunpack.c.l.b16 %v276
    %v412 = vunpack.c.l.b16 %v277
    %v413 = vunpack.c.l.b16 %v278
    %v414 = vunpack.c.l.b16 %v279
    %v415 = vunpack.c.l.b16 %v280
    %v416 = vunpack.c.l.b16 %v281
    %v417 = vunpack.c.l.b16 %v282
    %v418 = vunpack.c.l.b16 %v283
    %v419 = vunpack.c.l.b16 %v284
    %v420 = vunpack.c.l.b16 %v285
    %v421 = vunpack.c.l.b16 %v286
    %v422 = vunpack.c.l.b16 %v287
    %v423 = vunpack.c.l.b16 %v288
    %v424 = vunpack.c.l.b16 %v289
    %v425 = vunpack.c.l.b16 %v290
    %v426 = vunpack.c.l.b16 %v291
    %v427 = vunpack.c.l.b16 %v292
    %v428 = vunpack.c.l.b16 %v293
    %v429 = vunpack.c.l.b16 %v294
    %v430 = vunpack.c.l.b16 %v295
    %v431 = vunpack.c.l.b16 %v296
    %v432 = vunpack.c.l.b16 %v297
    %v433 = vunpack.c.l.b16 %v298
    %v434 = vpack.c.b16 %v371, %v370
    %v435 = vpack.c.b16 %v373, %v372
    %v436 = vpack.c.b16 %v375, %v374
    %v437 = vpack.c.b16 %v377, %v376
    %v438 = vpack.c.b16 %v379, %v378
    %v439 = vpack.c.b16 %v381, %v380
    %v440 = vpack.c.b16 %v383, %v382
    %v441 = vpack.c.b16 %v385, %v384
    %v442 = vpack.c.b16 %v387, %v386
    %v443 = vpack.c.b16 %v389, %v388
    %v444 = vpack.c.b16 %v391, %v390
    %v445 = vpack.c.b16 %v393, %v392
    %v446 = vpack.c.b16 %v395, %v394
    %v447 = vpack.c.b16 %v397, %v396
    %v448 = vpack.c.b16 %v399, %v398
    %v449 = vpack.c.b16 %v401, %v400
    %v450 = vpack.c.b16 %v403, %v402
    %v451 = vpack.c.b16 %v405, %v404
    %v452 = vpack.c.b16 %v407, %v406
    %v453 = vpack.c.b16 %v409, %v408
    %v454 = vpack.c.b16 %v411, %v410
    %v455 = vpack.c.b16 %v413, %v412
    %v456 = vpack.c.b16 %v415, %v414
    %v457 = vpack.c.b16 %v417, %v416
    %v458 = vpack.c.b16 %v419, %v418
    %v459 = vpack.c.b16 %v421, %v420
    %v460 = vpack.c.b16 %v423, %v422
    %v461 = vpack.c.b16 %v425, %v424
    %v462 = vpack.c.b16 %v427, %v426
    %v463 = vpack.c.b16 %v429, %v428
    %v464 = vpack.c.b16 %v431, %v430
    %v465 = vpack.c.b16 %v433, %v432
    %498 = vmatprep.subr.bf16.mxu0 0
    %499 = vmatpush1.bf16.msra.mxu0 %v434
    %500 = vmatprep.subr.bf16.mxu0 0
    %501 = vmatpush1.bf16.msra.mxu0 %v435
    %502 = vmatprep.subr.bf16.mxu0 0
    %503 = vmatpush1.bf16.msra.mxu0 %v436
    %504 = vmatprep.subr.bf16.mxu0 0
    %505 = vmatpush1.bf16.msra.mxu0 %v437
    %506 = vmatprep.subr.bf16.mxu0 0
    %507 = vmatpush1.bf16.msra.mxu0 %v438
    %508 = vmatprep.subr.bf16.mxu0 0
    %509 = vmatpush1.bf16.msra.mxu0 %v439
    %510 = vmatprep.subr.bf16.mxu0 0
    %511 = vmatpush1.bf16.msra.mxu0 %v440
    %512 = vmatprep.subr.bf16.mxu0 0
    %513 = vmatpush1.bf16.msra.mxu0 %v441
    %514 = vmatprep.subr.bf16.mxu0 0
    %515 = vmatpush1.bf16.msra.mxu0 %v442
    %516 = vmatprep.subr.bf16.mxu0 0
    %517 = vmatpush1.bf16.msra.mxu0 %v443
    %518 = vmatprep.subr.bf16.mxu0 0
    %519 = vmatpush1.bf16.msra.mxu0 %v444
    %520 = vmatprep.subr.bf16.mxu0 0
    %521 = vmatpush1.bf16.msra.mxu0 %v445
    %522 = vmatprep.subr.bf16.mxu0 0
    %523 = vmatpush1.bf16.msra.mxu0 %v446
    %524 = vmatprep.subr.bf16.mxu0 0
    %525 = vmatpush1.bf16.msra.mxu0 %v447
    %526 = vmatprep.subr.bf16.mxu0 0
    %527 = vmatpush1.bf16.msra.mxu0 %v448
    %528 = vmatprep.subr.bf16.mxu0 0
    %529 = vmatpush1.bf16.msra.mxu0 %v449
    %530 = vmatprep.mubr.bf16.mxu0 %v232
    %531 = vmatmul.mubr.bf16.gmra.mrb[0].mxu0 %v231
    %v532 = vpop.f32.mrb[0].mxu0
    %v533 = vadd.f32 %v304, %v532
    %v534 = vpop.f32.mrb[0].mxu0
    %v535 = vpop.f32.mrb[0].mxu0
    %v536 = vpop.f32.mrb[0].mxu0
    %537 = vdwg.mxu0
    %538 = vmatprep.subr.bf16.mxu0 0
    %539 = vmatpush1.bf16.msra.mxu0 %v450
    %540 = vmatprep.subr.bf16.mxu0 0
    %541 = vmatpush1.bf16.msra.mxu0 %v451
    %542 = vmatprep.subr.bf16.mxu0 0
    %543 = vmatpush1.bf16.msra.mxu0 %v452
    %544 = vmatprep.subr.bf16.mxu0 0
    %545 = vmatpush1.bf16.msra.mxu0 %v453
    %546 = vmatprep.subr.bf16.mxu0 0
    %547 = vmatpush1.bf16.msra.mxu0 %v454
    %548 = vmatprep.subr.bf16.mxu0 0
    %549 = vmatpush1.bf16.msra.mxu0 %v455
    %550 = vmatprep.subr.bf16.mxu0 0
    %551 = vmatpush1.bf16.msra.mxu0 %v456
    %552 = vmatprep.subr.bf16.mxu0 0
    %553 = vmatpush1.bf16.msra.mxu0 %v457
    %554 = vmatprep.subr.bf16.mxu0 0
    %555 = vmatpush1.bf16.msra.mxu0 %v458
    %556 = vmatprep.subr.bf16.mxu0 0
    %557 = vmatpush1.bf16.msra.mxu0 %v459
    %558 = vmatprep.subr.bf16.mxu0 0
    %559 = vmatpush1.bf16.msra.mxu0 %v460
    %560 = vmatprep.subr.bf16.mxu0 0
    %561 = vmatpush1.bf16.msra.mxu0 %v461
    %562 = vmatprep.subr.bf16.mxu0 0
    %563 = vmatpush1.bf16.msra.mxu0 %v462
    %564 = vmatprep.subr.bf16.mxu0 0
    %565 = vmatpush1.bf16.msra.mxu0 %v463
    %566 = vmatprep.subr.bf16.mxu0 0
    %567 = vmatpush1.bf16.msra.mxu0 %v464
    %568 = vmatprep.subr.bf16.mxu0 0
    %569 = vmatpush1.bf16.msra.mxu0 %v465
    %570 = vmatprep.mubr.bf16.mxu0 %v234
    %571 = vmatmul.mubr.bf16.gmra.mrb[0].mxu0 %v233
    %v572 = vpop.f32.mrb[0].mxu0
    %v573 = vadd.f32 %v533, %v572
    %v574 = vpop.f32.mrb[0].mxu0
    %v575 = vpop.f32.mrb[0].mxu0
    %v576 = vpop.f32.mrb[0].mxu0
    %577 = vdwg.mxu0
    %578 = vst [vmem:[#allocation2] sm:$0x3] %v573
    // Predicated region
    $region22: #{dqn_forward.7} parent=1 // pred_check
      _
    $region23: #{dqn_forward.7} parent=1 // pred_check_branch
      %580 = sbr.rel (0) target = $region25
    $region24: #{dqn_forward.7} parent=1 // pred_region
      %s582 = ssub.s32 32, 32
      %583 = vsyncadd [#allocation3], %s582
      %s585 = sshll.u32 [#allocation2], 4
      %s586 = int_to_ptr.vmem [resolvable:$true] %s585
      %588 = dma.vmem_to_hbm [thread:$0]  %s586, 32, %s5, [#allocation3]
    $region25: #{dqn_forward.7} parent=1 // pred_fallthru
      _
    // Predicated region
    $region26: #{dqn_forward.7} parent=1 // pred_check
      _
    $region27: #{dqn_forward.7} parent=1 // pred_check_branch
      %590 = sbr.rel (0) target = $region29
    $region28: #{dqn_forward.7} parent=1 // pred_region
      %591 = dma.done [#allocation3], 32
    $region29: #{dqn_forward.7} parent=1 // pred_fallthru
      _
    %592 = vsyncpa [#allocation3], 1

</llo_original>
